<compile_context>
chip_gen: v7x
topology: tpu7x:2x2x1
jax: 0.10.0
libtpu: 0.0.40
codegen_flags: <defaults>
</compile_context>

<pallas_src>
import numpy as np
import jax
import jax.numpy as jnp
from jax.experimental import pallas as pl
from jax.experimental.pallas import tpu as pltpu


def _round_up(x, m):
    return (x + m - 1) // m * m


# ----------------------------------------------------------------------------
# Pallas kernels
# ----------------------------------------------------------------------------
def _conv_relu_pool_kernel(w_ref, c_ref, b_ref, o_ref):
    """Fused conv-as-matmul + bias + ReLU + 2x2 maxpool.

    w: (O, Kp) bf16; c: (4, Kp, TM) bf16 (one patch matrix per pooling phase);
    b: (O, 1) f32; o: (O, TM) f32 with TM = lane-dense pooled spatial axis.
    """
    w = w_ref[...]
    acc = jnp.dot(w, c_ref[0], preferred_element_type=jnp.float32)
    for q in range(1, 4):
        acc = jnp.maximum(
            acc, jnp.dot(w, c_ref[q], preferred_element_type=jnp.float32))
    o_ref[...] = jnp.maximum(acc + b_ref[...], 0.0)


def _conv_relu_kernel(w_ref, c_ref, b_ref, o_ref):
    """Fused conv-as-matmul + bias + ReLU (no pooling)."""
    acc = jnp.dot(w_ref[...], c_ref[...], preferred_element_type=jnp.float32)
    o_ref[...] = jnp.maximum(acc + b_ref[...], 0.0)


def _head_kernel(f_ref, w1_ref, b1_ref, w2_ref, b2_ref, w3_ref, b3_ref, o_ref):
    """MLP head; AdaptiveAvgPool2d((2,2)) is pre-folded into w1.  144->64->16->2 -> softmax."""
    h1 = jnp.maximum(
        jnp.dot(f_ref[...], w1_ref[...], preferred_element_type=jnp.float32)
        + b1_ref[...], 0.0)
    h2 = jnp.maximum(
        jnp.dot(h1, w2_ref[...], preferred_element_type=jnp.float32)
        + b2_ref[...], 0.0)
    logits = (jnp.dot(h2, w3_ref[...], preferred_element_type=jnp.float32)
              + b3_ref[...])
    # TODO(synk): nn.Dropout(0.5) is the identity at inference time; the
    # training-mode stochastic mask is not implemented here.
    m = jnp.max(logits, axis=-1, keepdims=True)
    e = jnp.exp(logits - m)
    o_ref[...] = e / jnp.sum(e, axis=-1, keepdims=True)


# ----------------------------------------------------------------------------
# pallas_call wrappers
# ----------------------------------------------------------------------------
_MAX_TILE_M = 1024  # cap so large stages get >=2 grid blocks ("parallel" -> v7x megacore)


def _tile_m(M):
    tm = _MAX_TILE_M if M > _MAX_TILE_M else _round_up(M, 128)
    return tm, _round_up(M, tm)


def _conv_s2_relu_pool_stage(x, w_mat, bias):
    """Conv2d(3x3, stride 2, valid) + ReLU + MaxPool2d(2x2) as one Pallas call.

    x: (C, N, H, W) bf16; w_mat: (O, Kp) bf16 with Kp = round_up(C*9, 8);
    bias: (O, 1) f32.  Returns (O, N, Hp, Wp) f32.
    """
    C, N, H, W = x.shape
    O, Kp = w_mat.shape
    Ho, Wo = (H - 3) // 2 + 1, (W - 3) // 2 + 1
    Hp, Wp = Ho // 2, Wo // 2          # floor-mode pooling (matches PyTorch)
    K, M = C * 9, N * Hp * Wp

    # Transposed im2col: one (K, M) patch matrix per 2x2 pooling phase (ph, pw).
    # Only strided slices + contiguous reshapes -> no transposes of the feature map.
    phases = []
    for ph in range(2):
        for pw in range(2):
            taps = []
            for kh in range(3):
                for kw in range(3):
                    h0, w0 = 2 * ph + kh, 2 * pw + kw
                    taps.append(x[:, :, h0:h0 + 4 * Hp - 3:4,
                                       w0:w0 + 4 * Wp - 3:4])
            t = jnp.stack(taps, axis=1)          # (C, 9, N, Hp, Wp)
            phases.append(t.reshape(K, M))       # K ordered (c, kh, kw) = PyTorch
    cols = jnp.stack(phases, axis=0)             # (4, K, M)

    TM, M_pad = _tile_m(M)
    cols = jnp.pad(cols, ((0, 0), (0, Kp - K), (0, M_pad - M)))

    out = pl.pallas_call(
        _conv_relu_pool_kernel,
        grid=(M_pad // TM,),
        in_specs=[pl.BlockSpec((O, Kp), lambda i: (0, 0)),
                  pl.BlockSpec((4, Kp, TM), lambda i: (0, 0, i)),
                  pl.BlockSpec((O, 1), lambda i: (0, 0))],
        out_specs=pl.BlockSpec((O, TM), lambda i: (0, i)),
        out_shape=jax.ShapeDtypeStruct((O, M_pad), jnp.float32),
        compiler_params=pltpu.CompilerParams(
            dimension_semantics=("parallel",)),
    )(w_mat, cols, bias)
    return out[:, :M].reshape(O, N, Hp, Wp)


def _conv_s2_relu_stage(x, w_mat, bias):
    """Conv2d(3x3, stride 2, valid) + ReLU as one Pallas call (no pooling)."""
    C, N, H, W = x.shape
    O, Kp = w_mat.shape
    Ho, Wo = (H - 3) // 2 + 1, (W - 3) // 2 + 1
    K, M = C * 9, N * Ho * Wo

    taps = []
    for kh in range(3):
        for kw in range(3):
            taps.append(x[:, :, kh:kh + 2 * Ho - 1:2, kw:kw + 2 * Wo - 1:2])
    cols = jnp.stack(taps, axis=1).reshape(K, M)   # (K, M), K = (c, kh, kw)

    TM, M_pad = _tile_m(M)
    cols = jnp.pad(cols, ((0, Kp - K), (0, M_pad - M)))

    out = pl.pallas_call(
        _conv_relu_kernel,
        grid=(M_pad // TM,),
        in_specs=[pl.BlockSpec((O, Kp), lambda i: (0, 0)),
                  pl.BlockSpec((Kp, TM), lambda i: (0, i)),
                  pl.BlockSpec((O, 1), lambda i: (0, 0))],
        out_specs=pl.BlockSpec((O, TM), lambda i: (0, i)),
        out_shape=jax.ShapeDtypeStruct((O, M_pad), jnp.float32),
        compiler_params=pltpu.CompilerParams(
            dimension_semantics=("parallel",)),
    )(w_mat, cols, bias)
    return out[:, :M].reshape(O, N, Ho, Wo)


def _head_pallas(f, w1, b1, w2, b2, w3, b3):
    N = f.shape[0]
    args = (f, w1, b1, w2, b2, w3, b3)
    return pl.pallas_call(
        _head_kernel,
        grid=(1,),
        in_specs=[pl.BlockSpec(a.shape, lambda i, nd=a.ndim: (0,) * nd)
                  for a in args],
        out_specs=pl.BlockSpec((N, 2), lambda i: (0, 0)),
        out_shape=jax.ShapeDtypeStruct((N, 2), jnp.float32),
        compiler_params=pltpu.CompilerParams(
            dimension_semantics=("arbitrary",)),
    )(*args)


# ----------------------------------------------------------------------------
# Full forward pass (mirrors NN.forward; layer1_1 is defined but unused there)
# ----------------------------------------------------------------------------
def nn_forward(x, p):
    """x: PyTorch NCHW (N, 3, H, W) float32; p: prepared params."""
    xc = jnp.transpose(x, (1, 0, 2, 3)).astype(jnp.bfloat16)    # (C, N, H, W) once
    a1 = _conv_s2_relu_pool_stage(xc, p["w1m"], p["b1"])        # layer1+relu+maxpool
    a2 = _conv_s2_relu_pool_stage(a1.astype(jnp.bfloat16),
                                  p["w2m"], p["b2"])            # layer2+relu+maxpool
    a3 = _conv_s2_relu_stage(a2.astype(jnp.bfloat16),
                             p["w3m"], p["b3"])                 # layer3+relu
    N = x.shape[0]
    # tiny (16, N, Hf, Wf) -> (N, C*Hf*Wf): matches PyTorch .view(-1, 64) order
    f = jnp.transpose(a3, (1, 0, 2, 3)).reshape(N, -1)
    return _head_pallas(f, p["l1wf"], p["l1b"], p["l2w"], p["l2b"],
                        p["l3w"], p["l3b"])


# ----------------------------------------------------------------------------
# One-time parameter preparation (hoisted out of the forward path)
# ----------------------------------------------------------------------------
def _adaptive_pool_matrix(C, Hf, Wf):
    """Constant matrix realizing AdaptiveAvgPool2d((2,2)) + NCHW flatten."""
    P = np.zeros((C * Hf * Wf, C * 4), np.float32)
    for c in range(C):
        for i in range(2):
            hs, he = (i * Hf) // 2, -((-(i + 1) * Hf) // 2)
            for j in range(2):
                ws, we = (j * Wf) // 2, -((-(j + 1) * Wf) // 2)
                cnt = (he - hs) * (we - ws)
                for a in range(hs, he):
                    for b in range(ws, we):
                        P[c * Hf * Wf + a * Wf + b, c * 4 + i * 2 + j] = 1.0 / cnt
    return jnp.asarray(P)


def prepare_params(raw, input_hw):
    """Convert PyTorch-layout params into kernel-ready form (done once)."""
    def conv_prep(w, b):
        O, C, kh, kw = w.shape
        K = C * kh * kw
        Kp = _round_up(K, 8)                                     # sublane padding
        wm = jnp.pad(w.reshape(O, K), ((0, 0), (0, Kp - K))).astype(jnp.bfloat16)
        return wm, b.reshape(O, 1).astype(jnp.float32)

    w1m, b1 = conv_prep(raw["w1"], raw["c1"])
    w2m, b2 = conv_prep(raw["w2"], raw["c2"])
    w3m, b3 = conv_prep(raw["w3"], raw["c3"])

    def c(v):  # valid 3x3 / stride-2 conv output size
        return (v - 3) // 2 + 1
    H, W = input_hw
    Hf, Wf = c(c(c(H) // 2) // 2), c(c(c(W) // 2) // 2)          # conv3 spatial size
    C3 = raw["w3"].shape[0]
    assert C3 * 4 == 64, "Linear(in_features=64) expects 16 channels * 2x2 pool"
    # fold AdaptiveAvgPool2d((2,2)) + flatten into the first Linear weight
    l1wf = _adaptive_pool_matrix(C3, Hf, Wf) @ raw["l1w"]        # (C3*Hf*Wf, 64)

    return {"w1m": w1m, "b1": b1, "w2m": w2m, "b2": b2, "w3m": w3m, "b3": b3,
            "l1wf": l1wf, "l1b": raw["l1b"].reshape(1, -1),
            "l2w": raw["l2w"], "l2b": raw["l2b"].reshape(1, -1),
            "l3w": raw["l3w"], "l3b": raw["l3b"].reshape(1, -1)}


def init_params(key, hidden_dim1=8, hidden_dim2=16):
    ks = jax.random.split(key, 12)
    s = 0.05

    def nrm(k, shape):
        return s * jax.random.normal(k, shape, jnp.float32)

    return {
        # conv weights in PyTorch layout (O, C, kh, kw)
        "w1": nrm(ks[0], (hidden_dim1, 3, 3, 3)),
        "c1": nrm(ks[1], (hidden_dim1,)),
        "w2": nrm(ks[2], (hidden_dim2, hidden_dim1, 3, 3)),
        "c2": nrm(ks[3], (hidden_dim2,)),
        "w3": nrm(ks[4], (16, hidden_dim2, 3, 3)),
        "c3": nrm(ks[5], (16,)),
        # linear weights pre-transposed to (in_features, out_features)
        "l1w": nrm(ks[6], (64, 64)), "l1b": nrm(ks[7], (64,)),
        "l2w": nrm(ks[8], (64, 16)), "l2b": nrm(ks[9], (16,)),
        "l3w": nrm(ks[10], (16, 2)), "l3b": nrm(ks[11], (2,)),
    }


if __name__ == "__main__":
    key = jax.random.PRNGKey(0)
    k_in, k_par = jax.random.split(key)

    # 128x128 input: 128 -> 63 -> pool 31 -> 15 -> pool 7 -> 3 -> avgpool (2,2)
    # -> 64 features -> 2 classes.
    x = jax.random.normal(k_in, (2, 3, 128, 128), jnp.float32)
    raw = init_params(k_par, hidden_dim1=8, hidden_dim2=16)
    params = prepare_params(raw, input_hw=(128, 128))

    fwd = jax.jit(nn_forward)
    out = jax.block_until_ready(fwd(x, params))

    assert out.shape == (2, 2)
    assert bool(jnp.all(jnp.isfinite(out)))
    # softmax rows must sum to 1
    assert bool(jnp.allclose(jnp.sum(out, axis=-1), 1.0, atol=1e-5))
    print("KERNEL_OK")
</pallas_src>

<mosaic_0001>
module attributes {stable_mosaic.version = 11 : i64} {
  func.func @_conv_relu_pool_kernel(%arg0: i32, %arg1: memref<8x32xbf16, #tpu.memory_space<vmem>>, %arg2: memref<4x32x1024xbf16, #tpu.memory_space<vmem>>, %arg3: memref<8x1xf32, #tpu.memory_space<vmem>>, %arg4: memref<8x1024xf32, #tpu.memory_space<vmem>>) attributes {dimension_semantics = [#tpu.dimension_semantics<parallel>], iteration_bounds = array<i64: 2>, scalar_prefetch = 0 : i64, scratch_operands = 0 : i64, tpu.core_type = #tpu.core_type<tc>, window_params = [{pipeline_mode = #tpu.pipeline_mode<synchronous>, transform_indices = @transform_0, window_bounds = array<i64: 8, 32>}, {transform_indices = @transform_1, window_bounds = array<i64: 4, 32, 1024>}, {pipeline_mode = #tpu.pipeline_mode<synchronous>, transform_indices = @transform_2, window_bounds = array<i64: 8, 1>}, {transform_indices = @transform_3, window_bounds = array<i64: 8, 1024>}]} {
    %c0 = arith.constant 0 : index
    %c0_0 = arith.constant 0 : index
    %0 = vector.load %arg1[%c0, %c0_0] : memref<8x32xbf16, #tpu.memory_space<vmem>>, vector<8x32xbf16>
    %c0_1 = arith.constant 0 : index
    %c0_2 = arith.constant 0 : index
    %c0_3 = arith.constant 0 : index
    %1 = vector.load %arg2[%c0_1, %c0_2, %c0_3] : memref<4x32x1024xbf16, #tpu.memory_space<vmem>>, vector<1x32x1024xbf16>
    %2 = vector.shape_cast %1 : vector<1x32x1024xbf16> to vector<32x1024xbf16>
    %cst = arith.constant dense<0.000000e+00> : vector<8x1024xf32>
    %3 = tpu.matmul %0, %2, %cst {dimension_numbers = #tpu.dot_dimension_numbers<[1], [0], [0], [1], [0, 0, 1, 1], [], []>} : vector<8x32xbf16>, vector<32x1024xbf16>, vector<8x1024xf32> -> vector<8x1024xf32>
    %c1 = arith.constant 1 : index
    %c0_4 = arith.constant 0 : index
    %c0_5 = arith.constant 0 : index
    %4 = vector.load %arg2[%c1, %c0_4, %c0_5] : memref<4x32x1024xbf16, #tpu.memory_space<vmem>>, vector<1x32x1024xbf16>
    %5 = vector.shape_cast %4 : vector<1x32x1024xbf16> to vector<32x1024xbf16>
    %cst_6 = arith.constant dense<0.000000e+00> : vector<8x1024xf32>
    %6 = tpu.matmul %0, %5, %cst_6 {dimension_numbers = #tpu.dot_dimension_numbers<[1], [0], [0], [1], [0, 0, 1, 1], [], []>} : vector<8x32xbf16>, vector<32x1024xbf16>, vector<8x1024xf32> -> vector<8x1024xf32>
    %7 = arith.maximumf %3, %6 : vector<8x1024xf32>
    %c2 = arith.constant 2 : index
    %c0_7 = arith.constant 0 : index
    %c0_8 = arith.constant 0 : index
    %8 = vector.load %arg2[%c2, %c0_7, %c0_8] : memref<4x32x1024xbf16, #tpu.memory_space<vmem>>, vector<1x32x1024xbf16>
    %9 = vector.shape_cast %8 : vector<1x32x1024xbf16> to vector<32x1024xbf16>
    %cst_9 = arith.constant dense<0.000000e+00> : vector<8x1024xf32>
    %10 = tpu.matmul %0, %9, %cst_9 {dimension_numbers = #tpu.dot_dimension_numbers<[1], [0], [0], [1], [0, 0, 1, 1], [], []>} : vector<8x32xbf16>, vector<32x1024xbf16>, vector<8x1024xf32> -> vector<8x1024xf32>
    %11 = arith.maximumf %7, %10 : vector<8x1024xf32>
    %c3 = arith.constant 3 : index
    %c0_10 = arith.constant 0 : index
    %c0_11 = arith.constant 0 : index
    %12 = vector.load %arg2[%c3, %c0_10, %c0_11] : memref<4x32x1024xbf16, #tpu.memory_space<vmem>>, vector<1x32x1024xbf16>
    %13 = vector.shape_cast %12 : vector<1x32x1024xbf16> to vector<32x1024xbf16>
    %cst_12 = arith.constant dense<0.000000e+00> : vector<8x1024xf32>
    %14 = tpu.matmul %0, %13, %cst_12 {dimension_numbers = #tpu.dot_dimension_numbers<[1], [0], [0], [1], [0, 0, 1, 1], [], []>} : vector<8x32xbf16>, vector<32x1024xbf16>, vector<8x1024xf32> -> vector<8x1024xf32>
    %15 = arith.maximumf %11, %14 : vector<8x1024xf32>
    %c0_13 = arith.constant 0 : index
    %c0_14 = arith.constant 0 : index
    %16 = vector.load %arg3[%c0_13, %c0_14] : memref<8x1xf32, #tpu.memory_space<vmem>>, vector<8x1xf32>
    %17 = vector.broadcast %16 : vector<8x1xf32> to vector<8x1024xf32>
    %18 = arith.addf %15, %17 : vector<8x1024xf32>
    %cst_15 = arith.constant 0.000000e+00 : f32
    %19 = vector.broadcast %cst_15 : f32 to vector<8x1024xf32>
    %20 = arith.maximumf %18, %19 : vector<8x1024xf32>
    %c0_16 = arith.constant 0 : index
    %c0_17 = arith.constant 0 : index
    %21 = vector.load %arg4[%c0_16, %c0_17] : memref<8x1024xf32, #tpu.memory_space<vmem>>, vector<8x1024xf32>
    tpu.vector_store %arg4[%c0_16, %c0_17], %20 {strides = array<i32>} : memref<8x1024xf32, #tpu.memory_space<vmem>>, vector<8x1024xf32>,
    return
  }
  func.func @transform_0(%arg0: i32) -> (i32, i32) {
    %c0_i32 = arith.constant 0 : i32
    %c0_i32_0 = arith.constant 0 : i32
    %c0_i32_1 = arith.constant 0 : i32
    return %c0_i32, %c0_i32_0 : i32, i32
  }
  func.func @transform_1(%arg0: i32) -> (i32, i32, i32) {
    %c0_i32 = arith.constant 0 : i32
    %c0_i32_0 = arith.constant 0 : i32
    %c0_i32_1 = arith.constant 0 : i32
    return %c0_i32, %c0_i32_0, %arg0 : i32, i32, i32
  }
  func.func @transform_2(%arg0: i32) -> (i32, i32) {
    %c0_i32 = arith.constant 0 : i32
    %c0_i32_0 = arith.constant 0 : i32
    %c0_i32_1 = arith.constant 0 : i32
    return %c0_i32, %c0_i32_0 : i32, i32
  }
  func.func @transform_3(%arg0: i32) -> (i32, i32) {
    %c0_i32 = arith.constant 0 : i32
    %c0_i32_0 = arith.constant 0 : i32
    return %c0_i32, %arg0 : i32, i32
  }
}

module attributes {stable_mosaic.version = 11 : i64} {
  func.func @_conv_relu_pool_kernel(%arg0: i32, %arg1: memref<16x72xbf16, #tpu.memory_space<vmem>>, %arg2: memref<4x72x128xbf16, #tpu.memory_space<vmem>>, %arg3: memref<16x1xf32, #tpu.memory_space<vmem>>, %arg4: memref<16x128xf32, #tpu.memory_space<vmem>>) attributes {dimension_semantics = [#tpu.dimension_semantics<parallel>], iteration_bounds = array<i64: 1>, scalar_prefetch = 0 : i64, scratch_operands = 0 : i64, tpu.core_type = #tpu.core_type<tc>, window_params = [{pipeline_mode = #tpu.pipeline_mode<synchronous>, transform_indices = @transform_0, window_bounds = array<i64: 16, 72>}, {transform_indices = @transform_1, window_bounds = array<i64: 4, 72, 128>}, {pipeline_mode = #tpu.pipeline_mode<synchronous>, transform_indices = @transform_2, window_bounds = array<i64: 16, 1>}, {transform_indices = @transform_3, window_bounds = array<i64: 16, 128>}]} {
    %c0 = arith.constant 0 : index
    %c0_0 = arith.constant 0 : index
    %0 = vector.load %arg1[%c0, %c0_0] : memref<16x72xbf16, #tpu.memory_space<vmem>>, vector<16x72xbf16>
    %c0_1 = arith.constant 0 : index
    %c0_2 = arith.constant 0 : index
    %c0_3 = arith.constant 0 : index
    %1 = vector.load %arg2[%c0_1, %c0_2, %c0_3] : memref<4x72x128xbf16, #tpu.memory_space<vmem>>, vector<1x72x128xbf16>
    %2 = vector.shape_cast %1 : vector<1x72x128xbf16> to vector<72x128xbf16>
    %cst = arith.constant dense<0.000000e+00> : vector<16x128xf32>
    %3 = tpu.matmul %0, %2, %cst {dimension_numbers = #tpu.dot_dimension_numbers<[1], [0], [0], [1], [0, 0, 1, 1], [], []>} : vector<16x72xbf16>, vector<72x128xbf16>, vector<16x128xf32> -> vector<16x128xf32>
    %c1 = arith.constant 1 : index
    %c0_4 = arith.constant 0 : index
    %c0_5 = arith.constant 0 : index
    %4 = vector.load %arg2[%c1, %c0_4, %c0_5] : memref<4x72x128xbf16, #tpu.memory_space<vmem>>, vector<1x72x128xbf16>
    %5 = vector.shape_cast %4 : vector<1x72x128xbf16> to vector<72x128xbf16>
    %cst_6 = arith.constant dense<0.000000e+00> : vector<16x128xf32>
    %6 = tpu.matmul %0, %5, %cst_6 {dimension_numbers = #tpu.dot_dimension_numbers<[1], [0], [0], [1], [0, 0, 1, 1], [], []>} : vector<16x72xbf16>, vector<72x128xbf16>, vector<16x128xf32> -> vector<16x128xf32>
    %7 = arith.maximumf %3, %6 : vector<16x128xf32>
    %c2 = arith.constant 2 : index
    %c0_7 = arith.constant 0 : index
    %c0_8 = arith.constant 0 : index
    %8 = vector.load %arg2[%c2, %c0_7, %c0_8] : memref<4x72x128xbf16, #tpu.memory_space<vmem>>, vector<1x72x128xbf16>
    %9 = vector.shape_cast %8 : vector<1x72x128xbf16> to vector<72x128xbf16>
    %cst_9 = arith.constant dense<0.000000e+00> : vector<16x128xf32>
    %10 = tpu.matmul %0, %9, %cst_9 {dimension_numbers = #tpu.dot_dimension_numbers<[1], [0], [0], [1], [0, 0, 1, 1], [], []>} : vector<16x72xbf16>, vector<72x128xbf16>, vector<16x128xf32> -> vector<16x128xf32>
    %11 = arith.maximumf %7, %10 : vector<16x128xf32>
    %c3 = arith.constant 3 : index
    %c0_10 = arith.constant 0 : index
    %c0_11 = arith.constant 0 : index
    %12 = vector.load %arg2[%c3, %c0_10, %c0_11] : memref<4x72x128xbf16, #tpu.memory_space<vmem>>, vector<1x72x128xbf16>
    %13 = vector.shape_cast %12 : vector<1x72x128xbf16> to vector<72x128xbf16>
    %cst_12 = arith.constant dense<0.000000e+00> : vector<16x128xf32>
    %14 = tpu.matmul %0, %13, %cst_12 {dimension_numbers = #tpu.dot_dimension_numbers<[1], [0], [0], [1], [0, 0, 1, 1], [], []>} : vector<16x72xbf16>, vector<72x128xbf16>, vector<16x128xf32> -> vector<16x128xf32>
    %15 = arith.maximumf %11, %14 : vector<16x128xf32>
    %c0_13 = arith.constant 0 : index
    %c0_14 = arith.constant 0 : index
    %16 = vector.load %arg3[%c0_13, %c0_14] : memref<16x1xf32, #tpu.memory_space<vmem>>, vector<16x1xf32>
    %17 = vector.broadcast %16 : vector<16x1xf32> to vector<16x128xf32>
    %18 = arith.addf %15, %17 : vector<16x128xf32>
    %cst_15 = arith.constant 0.000000e+00 : f32
    %19 = vector.broadcast %cst_15 : f32 to vector<16x128xf32>
    %20 = arith.maximumf %18, %19 : vector<16x128xf32>
    %c0_16 = arith.constant 0 : index
    %c0_17 = arith.constant 0 : index
    %21 = vector.load %arg4[%c0_16, %c0_17] : memref<16x128xf32, #tpu.memory_space<vmem>>, vector<16x128xf32>
    tpu.vector_store %arg4[%c0_16, %c0_17], %20 {strides = array<i32>} : memref<16x128xf32, #tpu.memory_space<vmem>>, vector<16x128xf32>,
    return
  }
  func.func @transform_0(%arg0: i32) -> (i32, i32) {
    %c0_i32 = arith.constant 0 : i32
    %c0_i32_0 = arith.constant 0 : i32
    %c0_i32_1 = arith.constant 0 : i32
    return %c0_i32, %c0_i32_0 : i32, i32
  }
  func.func @transform_1(%arg0: i32) -> (i32, i32, i32) {
    %c0_i32 = arith.constant 0 : i32
    %c0_i32_0 = arith.constant 0 : i32
    %c0_i32_1 = arith.constant 0 : i32
    return %c0_i32, %c0_i32_0, %arg0 : i32, i32, i32
  }
  func.func @transform_2(%arg0: i32) -> (i32, i32) {
    %c0_i32 = arith.constant 0 : i32
    %c0_i32_0 = arith.constant 0 : i32
    %c0_i32_1 = arith.constant 0 : i32
    return %c0_i32, %c0_i32_0 : i32, i32
  }
  func.func @transform_3(%arg0: i32) -> (i32, i32) {
    %c0_i32 = arith.constant 0 : i32
    %c0_i32_0 = arith.constant 0 : i32
    return %c0_i32, %arg0 : i32, i32
  }
}

module attributes {stable_mosaic.version = 11 : i64} {
  func.func @_conv_relu_kernel(%arg0: i32, %arg1: memref<16x144xbf16, #tpu.memory_space<vmem>>, %arg2: memref<144x128xbf16, #tpu.memory_space<vmem>>, %arg3: memref<16x1xf32, #tpu.memory_space<vmem>>, %arg4: memref<16x128xf32, #tpu.memory_space<vmem>>) attributes {dimension_semantics = [#tpu.dimension_semantics<parallel>], iteration_bounds = array<i64: 1>, scalar_prefetch = 0 : i64, scratch_operands = 0 : i64, tpu.core_type = #tpu.core_type<tc>, window_params = [{pipeline_mode = #tpu.pipeline_mode<synchronous>, transform_indices = @transform_0, window_bounds = array<i64: 16, 144>}, {transform_indices = @transform_1, window_bounds = array<i64: 144, 128>}, {pipeline_mode = #tpu.pipeline_mode<synchronous>, transform_indices = @transform_2, window_bounds = array<i64: 16, 1>}, {transform_indices = @transform_3, window_bounds = array<i64: 16, 128>}]} {
    %c0 = arith.constant 0 : index
    %c0_0 = arith.constant 0 : index
    %0 = vector.load %arg1[%c0, %c0_0] : memref<16x144xbf16, #tpu.memory_space<vmem>>, vector<16x144xbf16>
    %c0_1 = arith.constant 0 : index
    %c0_2 = arith.constant 0 : index
    %1 = vector.load %arg2[%c0_1, %c0_2] : memref<144x128xbf16, #tpu.memory_space<vmem>>, vector<144x128xbf16>
    %cst = arith.constant dense<0.000000e+00> : vector<16x128xf32>
    %2 = tpu.matmul %0, %1, %cst {dimension_numbers = #tpu.dot_dimension_numbers<[1], [0], [0], [1], [0, 0, 1, 1], [], []>} : vector<16x144xbf16>, vector<144x128xbf16>, vector<16x128xf32> -> vector<16x128xf32>
    %c0_3 = arith.constant 0 : index
    %c0_4 = arith.constant 0 : index
    %3 = vector.load %arg3[%c0_3, %c0_4] : memref<16x1xf32, #tpu.memory_space<vmem>>, vector<16x1xf32>
    %4 = vector.broadcast %3 : vector<16x1xf32> to vector<16x128xf32>
    %5 = arith.addf %2, %4 : vector<16x128xf32>
    %cst_5 = arith.constant 0.000000e+00 : f32
    %6 = vector.broadcast %cst_5 : f32 to vector<16x128xf32>
    %7 = arith.maximumf %5, %6 : vector<16x128xf32>
    %c0_6 = arith.constant 0 : index
    %c0_7 = arith.constant 0 : index
    %8 = vector.load %arg4[%c0_6, %c0_7] : memref<16x128xf32, #tpu.memory_space<vmem>>, vector<16x128xf32>
    tpu.vector_store %arg4[%c0_6, %c0_7], %7 {strides = array<i32>} : memref<16x128xf32, #tpu.memory_space<vmem>>, vector<16x128xf32>,
    return
  }
  func.func @transform_0(%arg0: i32) -> (i32, i32) {
    %c0_i32 = arith.constant 0 : i32
    %c0_i32_0 = arith.constant 0 : i32
    %c0_i32_1 = arith.constant 0 : i32
    return %c0_i32, %c0_i32_0 : i32, i32
  }
  func.func @transform_1(%arg0: i32) -> (i32, i32) {
    %c0_i32 = arith.constant 0 : i32
    %c0_i32_0 = arith.constant 0 : i32
    return %c0_i32, %arg0 : i32, i32
  }
  func.func @transform_2(%arg0: i32) -> (i32, i32) {
    %c0_i32 = arith.constant 0 : i32
    %c0_i32_0 = arith.constant 0 : i32
    %c0_i32_1 = arith.constant 0 : i32
    return %c0_i32, %c0_i32_0 : i32, i32
  }
  func.func @transform_3(%arg0: i32) -> (i32, i32) {
    %c0_i32 = arith.constant 0 : i32
    %c0_i32_0 = arith.constant 0 : i32
    return %c0_i32, %arg0 : i32, i32
  }
}

module attributes {stable_mosaic.version = 11 : i64} {
  func.func @_head_kernel(%arg0: i32, %arg1: memref<2x144xf32, #tpu.memory_space<vmem>>, %arg2: memref<144x64xf32, #tpu.memory_space<vmem>>, %arg3: memref<1x64xf32, #tpu.memory_space<vmem>>, %arg4: memref<64x16xf32, #tpu.memory_space<vmem>>, %arg5: memref<1x16xf32, #tpu.memory_space<vmem>>, %arg6: memref<16x2xf32, #tpu.memory_space<vmem>>, %arg7: memref<1x2xf32, #tpu.memory_space<vmem>>, %arg8: memref<2x2xf32, #tpu.memory_space<vmem>>) attributes {dimension_semantics = [#tpu.dimension_semantics<arbitrary>], iteration_bounds = array<i64: 1>, scalar_prefetch = 0 : i64, scratch_operands = 0 : i64, tpu.core_type = #tpu.core_type<tc>, window_params = [{pipeline_mode = #tpu.pipeline_mode<synchronous>, transform_indices = @transform_0, window_bounds = array<i64: 2, 144>}, {pipeline_mode = #tpu.pipeline_mode<synchronous>, transform_indices = @transform_1, window_bounds = array<i64: 144, 64>}, {pipeline_mode = #tpu.pipeline_mode<synchronous>, transform_indices = @transform_2, window_bounds = array<i64: 1, 64>}, {pipeline_mode = #tpu.pipeline_mode<synchronous>, transform_indices = @transform_3, window_bounds = array<i64: 64, 16>}, {pipeline_mode = #tpu.pipeline_mode<synchronous>, transform_indices = @transform_4, window_bounds = array<i64: 1, 16>}, {pipeline_mode = #tpu.pipeline_mode<synchronous>, transform_indices = @transform_5, window_bounds = array<i64: 16, 2>}, {pipeline_mode = #tpu.pipeline_mode<synchronous>, transform_indices = @transform_6, window_bounds = array<i64: 1, 2>}, {pipeline_mode = #tpu.pipeline_mode<synchronous>, transform_indices = @transform_7, window_bounds = array<i64: 2, 2>}]} {
    %c0 = arith.constant 0 : index
    %c0_0 = arith.constant 0 : index
    %0 = vector.load %arg1[%c0, %c0_0] : memref<2x144xf32, #tpu.memory_space<vmem>>, vector<2x144xf32>
    %c0_1 = arith.constant 0 : index
    %c0_2 = arith.constant 0 : index
    %1 = vector.load %arg2[%c0_1, %c0_2] : memref<144x64xf32, #tpu.memory_space<vmem>>, vector<144x64xf32>
    %cst = arith.constant dense<0.000000e+00> : vector<2x64xf32>
    %2 = tpu.matmul %0, %1, %cst {dimension_numbers = #tpu.dot_dimension_numbers<[1], [0], [0], [1], [0, 0, 1, 1], [], []>} : vector<2x144xf32>, vector<144x64xf32>, vector<2x64xf32> -> vector<2x64xf32>
    %c0_3 = arith.constant 0 : index
    %c0_4 = arith.constant 0 : index
    %3 = vector.load %arg3[%c0_3, %c0_4] : memref<1x64xf32, #tpu.memory_space<vmem>>, vector<1x64xf32>
    %4 = vector.broadcast %3 : vector<1x64xf32> to vector<2x64xf32>
    %5 = arith.addf %2, %4 : vector<2x64xf32>
    %cst_5 = arith.constant 0.000000e+00 : f32
    %6 = vector.broadcast %cst_5 : f32 to vector<2x64xf32>
    %7 = arith.maximumf %5, %6 : vector<2x64xf32>
    %c0_6 = arith.constant 0 : index
    %c0_7 = arith.constant 0 : index
    %8 = vector.load %arg4[%c0_6, %c0_7] : memref<64x16xf32, #tpu.memory_space<vmem>>, vector<64x16xf32>
    %cst_8 = arith.constant dense<0.000000e+00> : vector<2x16xf32>
    %9 = tpu.matmul %7, %8, %cst_8 {dimension_numbers = #tpu.dot_dimension_numbers<[1], [0], [0], [1], [0, 0, 1, 1], [], []>} : vector<2x64xf32>, vector<64x16xf32>, vector<2x16xf32> -> vector<2x16xf32>
    %c0_9 = arith.constant 0 : index
    %c0_10 = arith.constant 0 : index
    %10 = vector.load %arg5[%c0_9, %c0_10] : memref<1x16xf32, #tpu.memory_space<vmem>>, vector<1x16xf32>
    %11 = vector.broadcast %10 : vector<1x16xf32> to vector<2x16xf32>
    %12 = arith.addf %9, %11 : vector<2x16xf32>
    %cst_11 = arith.constant 0.000000e+00 : f32
    %13 = vector.broadcast %cst_11 : f32 to vector<2x16xf32>
    %14 = arith.maximumf %12, %13 : vector<2x16xf32>
    %c0_12 = arith.constant 0 : index
    %c0_13 = arith.constant 0 : index
    %15 = vector.load %arg6[%c0_12, %c0_13] : memref<16x2xf32, #tpu.memory_space<vmem>>, vector<16x2xf32>
    %cst_14 = arith.constant dense<0.000000e+00> : vector<2x2xf32>
    %16 = tpu.matmul %14, %15, %cst_14 {dimension_numbers = #tpu.dot_dimension_numbers<[1], [0], [0], [1], [0, 0, 1, 1], [], []>} : vector<2x16xf32>, vector<16x2xf32>, vector<2x2xf32> -> vector<2x2xf32>
    %c0_15 = arith.constant 0 : index
    %c0_16 = arith.constant 0 : index
    %17 = vector.load %arg7[%c0_15, %c0_16] : memref<1x2xf32, #tpu.memory_space<vmem>>, vector<1x2xf32>
    %18 = vector.broadcast %17 : vector<1x2xf32> to vector<2x2xf32>
    %19 = arith.addf %16, %18 : vector<2x2xf32>
    %cst_17 = arith.constant dense<0xFF800000> : vector<2xf32>
    %20 = vector.multi_reduction <maximumf>, %19, %cst_17 [1] : vector<2x2xf32> to vector<2xf32>
    %21 = vector.shape_cast %20 : vector<2xf32> to vector<2x1xf32>
    %22 = vector.broadcast %21 : vector<2x1xf32> to vector<2x2xf32>
    %23 = arith.subf %19, %22 : vector<2x2xf32>
    %24 = math.exp %23 : vector<2x2xf32>
    %cst_18 = arith.constant dense<0.000000e+00> : vector<2xf32>
    %25 = vector.multi_reduction <add>, %24, %cst_18 [1] : vector<2x2xf32> to vector<2xf32>
    %26 = vector.shape_cast %25 : vector<2xf32> to vector<2x1xf32>
    %27 = vector.broadcast %26 : vector<2x1xf32> to vector<2x2xf32>
    %28 = arith.divf %24, %27 : vector<2x2xf32>
    %c0_19 = arith.constant 0 : index
    %c0_20 = arith.constant 0 : index
    %29 = vector.load %arg8[%c0_19, %c0_20] : memref<2x2xf32, #tpu.memory_space<vmem>>, vector<2x2xf32>
    tpu.vector_store %arg8[%c0_19, %c0_20], %28 {strides = array<i32>} : memref<2x2xf32, #tpu.memory_space<vmem>>, vector<2x2xf32>,
    return
  }
  func.func @transform_0(%arg0: i32) -> (i32, i32) {
    %c0_i32 = arith.constant 0 : i32
    %c0_i32_0 = arith.constant 0 : i32
    %c0_i32_1 = arith.constant 0 : i32
    return %c0_i32, %c0_i32_0 : i32, i32
  }
  func.func @transform_1(%arg0: i32) -> (i32, i32) {
    %c0_i32 = arith.constant 0 : i32
    %c0_i32_0 = arith.constant 0 : i32
    %c0_i32_1 = arith.constant 0 : i32
    return %c0_i32, %c0_i32_0 : i32, i32
  }
  func.func @transform_2(%arg0: i32) -> (i32, i32) {
    %c0_i32 = arith.constant 0 : i32
    %c0_i32_0 = arith.constant 0 : i32
    %c0_i32_1 = arith.constant 0 : i32
    return %c0_i32, %c0_i32_0 : i32, i32
  }
  func.func @transform_3(%arg0: i32) -> (i32, i32) {
    %c0_i32 = arith.constant 0 : i32
    %c0_i32_0 = arith.constant 0 : i32
    %c0_i32_1 = arith.constant 0 : i32
    return %c0_i32, %c0_i32_0 : i32, i32
  }
  func.func @transform_4(%arg0: i32) -> (i32, i32) {
    %c0_i32 = arith.constant 0 : i32
    %c0_i32_0 = arith.constant 0 : i32
    %c0_i32_1 = arith.constant 0 : i32
    return %c0_i32, %c0_i32_0 : i32, i32
  }
  func.func @transform_5(%arg0: i32) -> (i32, i32) {
    %c0_i32 = arith.constant 0 : i32
    %c0_i32_0 = arith.constant 0 : i32
    %c0_i32_1 = arith.constant 0 : i32
    return %c0_i32, %c0_i32_0 : i32, i32
  }
  func.func @transform_6(%arg0: i32) -> (i32, i32) {
    %c0_i32 = arith.constant 0 : i32
    %c0_i32_0 = arith.constant 0 : i32
    %c0_i32_1 = arith.constant 0 : i32
    return %c0_i32, %c0_i32_0 : i32, i32
  }
  func.func @transform_7(%arg0: i32) -> (i32, i32) {
    %c0_i32 = arith.constant 0 : i32
    %c0_i32_0 = arith.constant 0 : i32
    %c0_i32_1 = arith.constant 0 : i32
    return %c0_i32, %c0_i32_0 : i32, i32
  }
}

</mosaic_0001>

<llo_original>
// kernel: nn_forward.4
$region0: #{nn_forward.4}
  #allocation0 [shape = 'u32[]', space=smem, size = 0x4, offset = 0x4, fixed_abs, tag = 'smem constant byte address 0x4 - core index']
  #allocation1 [shape = 'u32[144,128]{1,0:T(1,128)}', space=vmem, size = 0x12000, scoped, tag = 'internal scratch']
  %s0 = inlined_call_operand.vmem [shape: bf16[8,32], index: 0, kind: input, shape index: {}]
  %s1 = inlined_call_operand.vmem [shape: bf16[4,32,2048], index: 1, kind: input, shape index: {}]
  %s2 = inlined_call_operand.vmem [shape: f32[8,1], index: 2, kind: input, shape index: {}]
  %s3 = inlined_call_operand.vmem [shape: f32[8,2048], index: 3, kind: output, shape index: {}]
  %s4 = sld [smem:[#allocation0]]
  $region68: #{nn_forward.4} parent=0
    _
  %s6 = ssub.s32 1, %s4
  %s7 = scalar_select 0, %s6, %s4
  $region1: #{nn_forward.4} parent=0
    #allocation2 [shape = 'u8[524288]{0}', space=vmem, size = 0x80000, scoped, tag = 'input window, operand 1']
    loop: start=0, step=1, limit=4
    $region2: #{nn_forward.4} parent=1 // loop_pre_header
      _
    $region3: #{nn_forward.4} parent=1 // loop_header
      %s9 = sphi 0, %s13
      %p10 = scmp.ge.s32.totalorder %s9, 4
      %s17 = sphi 0, %s17
      %s19 = sphi 0, %s17
      %s20 = sphi 0, %s19
      %s34 = sphi 0, %s20
      %s40 = sphi 0, %s42
      %s43 = sphi 0, %s40
      %s44 = sphi 0, %s43
      %s60 = sphi 0, %s44
      %s64 = sphi 0, %s64
      %s66 = sphi 0, %s64
      %s67 = sphi 0, %s66
      %s81 = sphi 0, %s67
      %s87 = sphi 0, %s89
      %s90 = sphi 0, %s87
      %s91 = sphi 0, %s90
      %s107 = sphi 0, %s91
    $region4: #{nn_forward.4} parent=1 // loop_header_branch
      %12 = sbr.rel (%p10) target = $region8
    $region5: #{nn_forward.4} parent=1 // loop_body
      %s14 = ssub.s32 %s9, 1
      %s15 = ssub.s32 %s9, 2
      %s16 = sadd.s32 %s9, 1
      %s18 = sadd.s32 %s17, 1
      %p21 = scmp.eq.s32.totalorder %s9, 1
      %p22 = scmp.ne.s32.totalorder %s17, %s19
      %p23 = scmp.eq.s32.totalorder %s9, 0
      %p24 = por %p22, %p23
      %p25 = scmp.ne.s32.totalorder %s17, %s19
      %p26 = scmp.eq.s32.totalorder %s14, 1
      %p27 = por %p25, %p26
      %p28 = scmp.ne.s32.totalorder %s19, %s20
      %p29 = scmp.eq.s32.totalorder %s14, 0
      %p30 = por %p28, %p29
      %p31 = scmp.ne.s32.totalorder %s19, %s20
      %p32 = scmp.eq.s32.totalorder %s15, 1
      %p33 = por %p31, %p32
      %p35 = scmp.ne.s32.totalorder %s20, %s34
      %p36 = scmp.eq.s32.totalorder %s15, 0
      %p37 = por %p35, %p36
      %s38 = ssub.s32 %s9, %s16
      %p39 = scmp.eq.s32.totalorder %s38, 0
      %s41 = sadd.s32 %s40, 1
      %s42 = scalar_select %p39, %s40, %s41
      %p45 = pneg %p39
      %p46 = scmp.eq.s32.totalorder %s9, 1
      %p47 = por %p45, %p46
      %p48 = scmp.ne.s32.totalorder %s40, %s43
      %p49 = scmp.eq.s32.totalorder %s9, 0
      %p50 = por %p48, %p49
      %p51 = scmp.ne.s32.totalorder %s40, %s43
      %p52 = scmp.eq.s32.totalorder %s14, 1
      %p53 = por %p51, %p52
      %p54 = scmp.ne.s32.totalorder %s43, %s44
      %p55 = scmp.eq.s32.totalorder %s14, 0
      %p56 = por %p54, %p55
      %p57 = scmp.ne.s32.totalorder %s43, %s44
      %p58 = scmp.eq.s32.totalorder %s15, 1
      %p59 = por %p57, %p58
      %p61 = scmp.ne.s32.totalorder %s44, %s60
      %p62 = scmp.eq.s32.totalorder %s15, 0
      %p63 = por %p61, %p62
      %s65 = sadd.s32 %s64, 1
      %p68 = scmp.eq.s32.totalorder %s9, 1
      %p69 = scmp.ne.s32.totalorder %s64, %s66
      %p70 = scmp.eq.s32.totalorder %s9, 0
      %p71 = por %p69, %p70
      %p72 = scmp.ne.s32.totalorder %s64, %s66
      %p73 = scmp.eq.s32.totalorder %s14, 1
      %p74 = por %p72, %p73
      %p75 = scmp.ne.s32.totalorder %s66, %s67
      %p76 = scmp.eq.s32.totalorder %s14, 0
      %p77 = por %p75, %p76
      %p78 = scmp.ne.s32.totalorder %s66, %s67
      %p79 = scmp.eq.s32.totalorder %s15, 1
      %p80 = por %p78, %p79
      %p82 = scmp.ne.s32.totalorder %s67, %s81
      %p83 = scmp.eq.s32.totalorder %s15, 0
      %p84 = por %p82, %p83
      %s85 = ssub.s32 %s9, %s16
      %p86 = scmp.eq.s32.totalorder %s85, 0
      %s88 = sadd.s32 %s87, 1
      %s89 = scalar_select %p86, %s87, %s88
      %p92 = pneg %p86
      %p93 = scmp.eq.s32.totalorder %s9, 1
      %p94 = por %p92, %p93
      %p95 = scmp.ne.s32.totalorder %s87, %s90
      %p96 = scmp.eq.s32.totalorder %s9, 0
      %p97 = por %p95, %p96
      %p98 = scmp.ne.s32.totalorder %s87, %s90
      %p99 = scmp.eq.s32.totalorder %s14, 1
      %p100 = por %p98, %p99
      %p101 = scmp.ne.s32.totalorder %s90, %s91
      %p102 = scmp.eq.s32.totalorder %s14, 0
      %p103 = por %p101, %p102
      %p104 = scmp.ne.s32.totalorder %s90, %s91
      %p105 = scmp.eq.s32.totalorder %s15, 1
      %p106 = por %p104, %p105
      %p108 = scmp.ne.s32.totalorder %s91, %s107
      %p109 = scmp.eq.s32.totalorder %s15, 0
      %p110 = por %p108, %p109
      %p111 = scmp.le.s32.totalorder 1, %s9
      %p112 = scmp.lt.s32.totalorder %s9, 3
      %p113 = pnand %p111, %p112
      %p114 = pneg %p113
      // Predicated region
      $region9: #{nn_forward.4} parent=5 // pred_check
        _
      $region10: #{nn_forward.4} parent=5 // pred_check_branch
        %116 = sbr.rel (%p113) target = $region12
      $region11: #{nn_forward.4} parent=5 // pred_region
        %s117 = ssub.s32 %s9, 1
        // Predicated region
        $region13: #{nn_forward.4} parent=11 // pred_check
          %p118 = pneg %p30
        $region14: #{nn_forward.4} parent=11 // pred_check_branch
          %120 = sbr.rel (%p118) target = $region16
        $region15: #{nn_forward.4} parent=11 // pred_region
          _
        $region16: #{nn_forward.4} parent=11 // pred_fallthru
          _
        // Predicated region
        $region17: #{nn_forward.4} parent=11 // pred_check
          %p121 = pneg %p77
        $region18: #{nn_forward.4} parent=11 // pred_check_branch
          %123 = sbr.rel (%p121) target = $region20
        $region19: #{nn_forward.4} parent=11 // pred_region
          _
        $region20: #{nn_forward.4} parent=11 // pred_fallthru
          _
      $region12: #{nn_forward.4} parent=5 // pred_fallthru
        _
      %p124 = scmp.lt.s32.totalorder %s9, 2
      // Predicated region
      $region21: #{nn_forward.4} parent=5 // pred_check
        %p125 = pneg %p124
      $region22: #{nn_forward.4} parent=5 // pred_check_branch
        %127 = sbr.rel (%p125) target = $region24
      $region23: #{nn_forward.4} parent=5 // pred_region
        // Predicated region
        $region25: #{nn_forward.4} parent=23 // pred_check
          %p128 = pneg %p50
        $region26: #{nn_forward.4} parent=23 // pred_check_branch
          %130 = sbr.rel (%p128) target = $region28
        $region27: #{nn_forward.4} parent=23 // pred_region
          %s131 = sand.u32 %s40, 1
          %s132 = sand.u32 %s40, 1
          %s133 = smul.addr %s132, 512
          %s134 = scalar_lea.vmem [#allocation2], %s133
          %s135 = smul.u32 8, %s9
          %s136 = smul.addr %s135, 4
          %s137 = scalar_lea.vmem %s1, %s136
          // Predicated region
          $region29: #{nn_forward.4} parent=27 // pred_check
            _
          $region30: #{nn_forward.4} parent=27 // pred_check_branch
            %139 = sbr.rel (0) target = $region32
          $region31: #{nn_forward.4} parent=27 // pred_region
            // Predicated region
            $region33: #{nn_forward.4} parent=31 // pred_check
              _
            $region34: #{nn_forward.4} parent=31 // pred_check_branch
              %141 = sbr.rel (0) target = $region36
            $region35: #{nn_forward.4} parent=31 // pred_region
              loop: start=0, step=1, limit=1
              $region37: #{nn_forward.4} parent=35 // loop_pre_header
                _
              $region38: #{nn_forward.4} parent=35 // loop_header
                %s143 = sphi 0, %s147
                %p144 = scmp.ge.s32.totalorder %s143, 1
                %s148 = sphi %s137, %s137
                %s149 = sphi %s134, %s134
              $region39: #{nn_forward.4} parent=35 // loop_header_branch
                %146 = sbr.rel (%p144) target = $region43
              $region40: #{nn_forward.4} parent=35 // loop_body
                %v150 = vld [vmem:[%s148] sm:$0xff]
                %151 = vst [vmem:[%s149] sm:$0xff] %v150
                %v152 = vld [vmem:[%s148 + $0x8] sm:$0xff]
                %153 = vst [vmem:[%s149 + $0x8] sm:$0xff] %v152
                %v154 = vld [vmem:[%s148 + $0x10] sm:$0xff]
                %155 = vst [vmem:[%s149 + $0x10] sm:$0xff] %v154
                %v156 = vld [vmem:[%s148 + $0x18] sm:$0xff]
                %157 = vst [vmem:[%s149 + $0x18] sm:$0xff] %v156
                %v158 = vld [vmem:[%s148 + $0x40] sm:$0xff]
                %159 = vst [vmem:[%s149 + $0x20] sm:$0xff] %v158
                %v160 = vld [vmem:[%s148 + $0x48] sm:$0xff]
                %161 = vst [vmem:[%s149 + $0x28] sm:$0xff] %v160
                %v162 = vld [vmem:[%s148 + $0x50] sm:$0xff]
                %163 = vst [vmem:[%s149 + $0x30] sm:$0xff] %v162
                %v164 = vld [vmem:[%s148 + $0x58] sm:$0xff]
                %165 = vst [vmem:[%s149 + $0x38] sm:$0xff] %v164
                %v166 = vld [vmem:[%s148 + $0x80] sm:$0xff]
                %167 = vst [vmem:[%s149 + $0x40] sm:$0xff] %v166
                %v168 = vld [vmem:[%s148 + $0x88] sm:$0xff]
                %169 = vst [vmem:[%s149 + $0x48] sm:$0xff] %v168
                %v170 = vld [vmem:[%s148 + $0x90] sm:$0xff]
                %171 = vst [vmem:[%s149 + $0x50] sm:$0xff] %v170
                %v172 = vld [vmem:[%s148 + $0x98] sm:$0xff]
                %173 = vst [vmem:[%s149 + $0x58] sm:$0xff] %v172
                %v174 = vld [vmem:[%s148 + $0xc0] sm:$0xff]
                %175 = vst [vmem:[%s149 + $0x60] sm:$0xff] %v174
                %v176 = vld [vmem:[%s148 + $0xc8] sm:$0xff]
                %177 = vst [vmem:[%s149 + $0x68] sm:$0xff] %v176
                %v178 = vld [vmem:[%s148 + $0xd0] sm:$0xff]
                %179 = vst [vmem:[%s149 + $0x70] sm:$0xff] %v178
                %v180 = vld [vmem:[%s148 + $0xd8] sm:$0xff]
                %181 = vst [vmem:[%s149 + $0x78] sm:$0xff] %v180
                %v182 = vld [vmem:[%s148 + $0x100] sm:$0xff]
                %183 = vst [vmem:[%s149 + $0x80] sm:$0xff] %v182
                %v184 = vld [vmem:[%s148 + $0x108] sm:$0xff]
                %185 = vst [vmem:[%s149 + $0x88] sm:$0xff] %v184
                %v186 = vld [vmem:[%s148 + $0x110] sm:$0xff]
                %187 = vst [vmem:[%s149 + $0x90] sm:$0xff] %v186
                %v188 = vld [vmem:[%s148 + $0x118] sm:$0xff]
                %189 = vst [vmem:[%s149 + $0x98] sm:$0xff] %v188
                %v190 = vld [vmem:[%s148 + $0x140] sm:$0xff]
                %191 = vst [vmem:[%s149 + $0xa0] sm:$0xff] %v190
                %v192 = vld [vmem:[%s148 + $0x148] sm:$0xff]
                %193 = vst [vmem:[%s149 + $0xa8] sm:$0xff] %v192
                %v194 = vld [vmem:[%s148 + $0x150] sm:$0xff]
                %195 = vst [vmem:[%s149 + $0xb0] sm:$0xff] %v194
                %v196 = vld [vmem:[%s148 + $0x158] sm:$0xff]
                %197 = vst [vmem:[%s149 + $0xb8] sm:$0xff] %v196
                %v198 = vld [vmem:[%s148 + $0x180] sm:$0xff]
                %199 = vst [vmem:[%s149 + $0xc0] sm:$0xff] %v198
                %v200 = vld [vmem:[%s148 + $0x188] sm:$0xff]
                %201 = vst [vmem:[%s149 + $0xc8] sm:$0xff] %v200
                %v202 = vld [vmem:[%s148 + $0x190] sm:$0xff]
                %203 = vst [vmem:[%s149 + $0xd0] sm:$0xff] %v202
                %v204 = vld [vmem:[%s148 + $0x198] sm:$0xff]
                %205 = vst [vmem:[%s149 + $0xd8] sm:$0xff] %v204
                %v206 = vld [vmem:[%s148 + $0x1c0] sm:$0xff]
                %207 = vst [vmem:[%s149 + $0xe0] sm:$0xff] %v206
                %v208 = vld [vmem:[%s148 + $0x1c8] sm:$0xff]
                %209 = vst [vmem:[%s149 + $0xe8] sm:$0xff] %v208
                %v210 = vld [vmem:[%s148 + $0x1d0] sm:$0xff]
                %211 = vst [vmem:[%s149 + $0xf0] sm:$0xff] %v210
                %v212 = vld [vmem:[%s148 + $0x1d8] sm:$0xff]
                %213 = vst [vmem:[%s149 + $0xf8] sm:$0xff] %v212
                %v214 = vld [vmem:[%s148 + $0x200] sm:$0xff]
                %215 = vst [vmem:[%s149 + $0x100] sm:$0xff] %v214
                %v216 = vld [vmem:[%s148 + $0x208] sm:$0xff]
                %217 = vst [vmem:[%s149 + $0x108] sm:$0xff] %v216
                %v218 = vld [vmem:[%s148 + $0x210] sm:$0xff]
                %219 = vst [vmem:[%s149 + $0x110] sm:$0xff] %v218
                %v220 = vld [vmem:[%s148 + $0x218] sm:$0xff]
                %221 = vst [vmem:[%s149 + $0x118] sm:$0xff] %v220
                %v222 = vld [vmem:[%s148 + $0x240] sm:$0xff]
                %223 = vst [vmem:[%s149 + $0x120] sm:$0xff] %v222
                %v224 = vld [vmem:[%s148 + $0x248] sm:$0xff]
                %225 = vst [vmem:[%s149 + $0x128] sm:$0xff] %v224
                %v226 = vld [vmem:[%s148 + $0x250] sm:$0xff]
                %227 = vst [vmem:[%s149 + $0x130] sm:$0xff] %v226
                %v228 = vld [vmem:[%s148 + $0x258] sm:$0xff]
                %229 = vst [vmem:[%s149 + $0x138] sm:$0xff] %v228
                %v230 = vld [vmem:[%s148 + $0x280] sm:$0xff]
                %231 = vst [vmem:[%s149 + $0x140] sm:$0xff] %v230
                %v232 = vld [vmem:[%s148 + $0x288] sm:$0xff]
                %233 = vst [vmem:[%s149 + $0x148] sm:$0xff] %v232
                %v234 = vld [vmem:[%s148 + $0x290] sm:$0xff]
                %235 = vst [vmem:[%s149 + $0x150] sm:$0xff] %v234
                %v236 = vld [vmem:[%s148 + $0x298] sm:$0xff]
                %237 = vst [vmem:[%s149 + $0x158] sm:$0xff] %v236
                %v238 = vld [vmem:[%s148 + $0x2c0] sm:$0xff]
                %239 = vst [vmem:[%s149 + $0x160] sm:$0xff] %v238
                %v240 = vld [vmem:[%s148 + $0x2c8] sm:$0xff]
                %241 = vst [vmem:[%s149 + $0x168] sm:$0xff] %v240
                %v242 = vld [vmem:[%s148 + $0x2d0] sm:$0xff]
                %243 = vst [vmem:[%s149 + $0x170] sm:$0xff] %v242
                %v244 = vld [vmem:[%s148 + $0x2d8] sm:$0xff]
                %245 = vst [vmem:[%s149 + $0x178] sm:$0xff] %v244
                %v246 = vld [vmem:[%s148 + $0x300] sm:$0xff]
                %247 = vst [vmem:[%s149 + $0x180] sm:$0xff] %v246
                %v248 = vld [vmem:[%s148 + $0x308] sm:$0xff]
                %249 = vst [vmem:[%s149 + $0x188] sm:$0xff] %v248
                %v250 = vld [vmem:[%s148 + $0x310] sm:$0xff]
                %251 = vst [vmem:[%s149 + $0x190] sm:$0xff] %v250
                %v252 = vld [vmem:[%s148 + $0x318] sm:$0xff]
                %253 = vst [vmem:[%s149 + $0x198] sm:$0xff] %v252
                %v254 = vld [vmem:[%s148 + $0x340] sm:$0xff]
                %255 = vst [vmem:[%s149 + $0x1a0] sm:$0xff] %v254
                %v256 = vld [vmem:[%s148 + $0x348] sm:$0xff]
                %257 = vst [vmem:[%s149 + $0x1a8] sm:$0xff] %v256
                %v258 = vld [vmem:[%s148 + $0x350] sm:$0xff]
                %259 = vst [vmem:[%s149 + $0x1b0] sm:$0xff] %v258
                %v260 = vld [vmem:[%s148 + $0x358] sm:$0xff]
                %261 = vst [vmem:[%s149 + $0x1b8] sm:$0xff] %v260
                %v262 = vld [vmem:[%s148 + $0x380] sm:$0xff]
                %263 = vst [vmem:[%s149 + $0x1c0] sm:$0xff] %v262
                %v264 = vld [vmem:[%s148 + $0x388] sm:$0xff]
                %265 = vst [vmem:[%s149 + $0x1c8] sm:$0xff] %v264
                %v266 = vld [vmem:[%s148 + $0x390] sm:$0xff]
                %267 = vst [vmem:[%s149 + $0x1d0] sm:$0xff] %v266
                %v268 = vld [vmem:[%s148 + $0x398] sm:$0xff]
                %269 = vst [vmem:[%s149 + $0x1d8] sm:$0xff] %v268
                %v270 = vld [vmem:[%s148 + $0x3c0] sm:$0xff]
                %271 = vst [vmem:[%s149 + $0x1e0] sm:$0xff] %v270
                %v272 = vld [vmem:[%s148 + $0x3c8] sm:$0xff]
                %273 = vst [vmem:[%s149 + $0x1e8] sm:$0xff] %v272
                %v274 = vld [vmem:[%s148 + $0x3d0] sm:$0xff]
                %275 = vst [vmem:[%s149 + $0x1f0] sm:$0xff] %v274
                %v276 = vld [vmem:[%s148 + $0x3d8] sm:$0xff]
                %277 = vst [vmem:[%s149 + $0x1f8] sm:$0xff] %v276
              $region41: #{nn_forward.4} parent=35 // loop_footer
                %s147 = sadd.s32 1, %s143
              $region42: #{nn_forward.4} parent=35 // loop_footer_branch
                %142 = sbr.rel target = $region38
              $region43: #{nn_forward.4} parent=35 // loop_exit
                _
            $region36: #{nn_forward.4} parent=31 // pred_fallthru
              _
            // Predicated region
            $region44: #{nn_forward.4} parent=31 // pred_check
              _
            $region45: #{nn_forward.4} parent=31 // pred_check_branch
              %279 = sbr.rel target = $region47
            $region46: #{nn_forward.4} parent=31 // pred_region
              _
            $region47: #{nn_forward.4} parent=31 // pred_fallthru
              _
          $region32: #{nn_forward.4} parent=27 // pred_fallthru
            _
          %280 = vnop
        $region28: #{nn_forward.4} parent=23 // pred_fallthru
          _
      $region24: #{nn_forward.4} parent=5 // pred_fallthru
        _
      %p281 = scmp.le.s32.totalorder 1, %s9
      %p282 = scmp.lt.s32.totalorder %s9, 3
      %p283 = pnand %p281, %p282
      %p284 = pneg %p283
      // Predicated region
      $region48: #{nn_forward.4} parent=5 // pred_check
        _
      $region49: #{nn_forward.4} parent=5 // pred_check_branch
        %286 = sbr.rel (%p283) target = $region51
      $region50: #{nn_forward.4} parent=5 // pred_region
        %s287 = ssub.s32 %s9, 1
        %s288 = sand.u32 %s43, 1
        %s289 = sand.u32 %s43, 1
        %s290 = smul.addr %s289, 512
        %s291 = scalar_lea.vmem [#allocation2], %s290
        // Predicated region
        $region52: #{nn_forward.4} parent=50 // pred_check
          %p292 = pneg %p56
        $region53: #{nn_forward.4} parent=50 // pred_check_branch
          %294 = sbr.rel (%p292) target = $region55
        $region54: #{nn_forward.4} parent=50 // pred_region
          _
        $region55: #{nn_forward.4} parent=50 // pred_fallthru
          _
        %p295 = pneg %p30
        %p296 = pneg %p27
        %s297 = sand.u32 %s43, 1
        %s298 = sand.u32 %s43, 1
        %s299 = smul.addr %s298, 512
        %s300 = scalar_lea.vmem [#allocation2], %s299
        %p301 = pneg %p56
        %p302 = pneg %p53
        %p303 = pneg %p77
        %p304 = pneg %p74
        %p305 = pneg %p103
        %p306 = pneg %p100
        %s307 = smul.u32 8, %s14
        %p308 = scmp.lt.s32.totalorder %s307, 15
        %s309 = scalar_select %p308, %s307, 15
        %s310 = smul.addr %s309, 8
        %s311 = scalar_lea.vmem %s3, %s310
        %s312 = smul.u32 8, %s14
        %s313 = smul.u32 8, %s14
        %p314 = scmp.lt.s32.totalorder %s313, 15
        %s315 = scalar_select %p314, %s313, 15
        %s316 = smul.addr %s315, 8
        %s317 = scalar_lea.vmem %s3, %s316
        %s318 = smul.u32 8, %s14
        %v320 = vld [vmem:[%s0] sm:$0xf]
        %v321 = vld [vmem:[%s291] sm:$0xff]
        %v322 = vld [vmem:[%s291 + $0x8] sm:$0xff]
        %v323 = vld [vmem:[%s291 + $0x10] sm:$0xff]
        %v324 = vld [vmem:[%s291 + $0x18] sm:$0xff]
        %v325 = vld [vmem:[%s291 + $0x20] sm:$0xff]
        %v326 = vld [vmem:[%s291 + $0x28] sm:$0xff]
        %v327 = vld [vmem:[%s291 + $0x30] sm:$0xff]
        %v328 = vld [vmem:[%s291 + $0x38] sm:$0xff]
        %v329 = vld [vmem:[%s291 + $0x40] sm:$0xff]
        %v330 = vld [vmem:[%s291 + $0x48] sm:$0xff]
        %v331 = vld [vmem:[%s291 + $0x50] sm:$0xff]
        %v332 = vld [vmem:[%s291 + $0x58] sm:$0xff]
        %v333 = vld [vmem:[%s291 + $0x60] sm:$0xff]
        %v334 = vld [vmem:[%s291 + $0x68] sm:$0xff]
        %v335 = vld [vmem:[%s291 + $0x70] sm:$0xff]
        %v336 = vld [vmem:[%s291 + $0x78] sm:$0xff]
        %v353 = vunpack.c.l.b16 %v321
        %v354 = vunpack.c.h.b16 %v321
        %v355 = vunpack.c.l.b16 %v322
        %v356 = vunpack.c.h.b16 %v322
        %v357 = vunpack.c.l.b16 %v323
        %v358 = vunpack.c.h.b16 %v323
        %v359 = vunpack.c.l.b16 %v324
        %v360 = vunpack.c.h.b16 %v324
        %v361 = vunpack.c.l.b16 %v325
        %v362 = vunpack.c.h.b16 %v325
        %v363 = vunpack.c.l.b16 %v326
        %v364 = vunpack.c.h.b16 %v326
        %v365 = vunpack.c.l.b16 %v327
        %v366 = vunpack.c.h.b16 %v327
        %v367 = vunpack.c.l.b16 %v328
        %v368 = vunpack.c.h.b16 %v328
        %v369 = vunpack.c.l.b16 %v329
        %v370 = vunpack.c.h.b16 %v329
        %v371 = vunpack.c.l.b16 %v330
        %v372 = vunpack.c.h.b16 %v330
        %v373 = vunpack.c.l.b16 %v331
        %v374 = vunpack.c.h.b16 %v331
        %v375 = vunpack.c.l.b16 %v332
        %v376 = vunpack.c.h.b16 %v332
        %v377 = vunpack.c.l.b16 %v333
        %v378 = vunpack.c.h.b16 %v333
        %v379 = vunpack.c.l.b16 %v334
        %v380 = vunpack.c.h.b16 %v334
        %v381 = vunpack.c.l.b16 %v335
        %v382 = vunpack.c.h.b16 %v335
        %v383 = vunpack.c.l.b16 %v336
        %v384 = vunpack.c.h.b16 %v336
        %v385 = vpack.c.b16 %v361, %v353
        %v386 = vpack.c.b16 %v362, %v354
        %v387 = vpack.c.b16 %v363, %v355
        %v388 = vpack.c.b16 %v364, %v356
        %v389 = vpack.c.b16 %v365, %v357
        %v390 = vpack.c.b16 %v366, %v358
        %v391 = vpack.c.b16 %v367, %v359
        %v392 = vpack.c.b16 %v368, %v360
        %v393 = vpack.c.b16 %v377, %v369
        %v394 = vpack.c.b16 %v378, %v370
        %v395 = vpack.c.b16 %v379, %v371
        %v396 = vpack.c.b16 %v380, %v372
        %v397 = vpack.c.b16 %v381, %v373
        %v398 = vpack.c.b16 %v382, %v374
        %v399 = vpack.c.b16 %v383, %v375
        %v400 = vpack.c.b16 %v384, %v376
        %vm417 = vcmask 261120
        %v419 = vsel %vm417, %v320, 0
        %421 = vmatprep.subr.bf16.mxu0 %v386
        %422 = vmatpush1.bf16.msra.mxu0 %v385
        %423 = vmatprep.subr.bf16.mxu0 %v394
        %424 = vmatpush1.bf16.msra.mxu0 %v393
        %425 = vmatprep.subr.bf16.mxu0 0
        %426 = vmatpush1.bf16.msra.mxu0 0
        %427 = vmatprep.subr.bf16.mxu0 0
        %428 = vmatpush1.bf16.msra.mxu0 0
        %429 = vmatprep.subr.bf16.mxu0 0
        %430 = vmatpush1.bf16.msra.mxu0 0
        %431 = vmatprep.subr.bf16.mxu0 0
        %432 = vmatpush1.bf16.msra.mxu0 0
        %433 = vmatprep.subr.bf16.mxu0 0
        %434 = vmatpush1.bf16.msra.mxu0 0
        %435 = vmatprep.subr.bf16.mxu0 0
        %436 = vmatpush1.bf16.msra.mxu0 0
        %437 = vmatprep.subr.bf16.mxu0 0
        %438 = vmatpush1.bf16.msra.mxu0 0
        %439 = vmatprep.subr.bf16.mxu0 0
        %440 = vmatpush1.bf16.msra.mxu0 0
        %441 = vmatprep.subr.bf16.mxu0 0
        %442 = vmatpush1.bf16.msra.mxu0 0
        %443 = vmatprep.subr.bf16.mxu0 0
        %444 = vmatpush1.bf16.msra.mxu0 0
        %445 = vmatprep.subr.bf16.mxu0 0
        %446 = vmatpush1.bf16.msra.mxu0 0
        %447 = vmatprep.subr.bf16.mxu0 0
        %448 = vmatpush1.bf16.msra.mxu0 0
        %449 = vmatprep.subr.bf16.mxu0 0
        %450 = vmatpush1.bf16.msra.mxu0 0
        %451 = vmatprep.subr.bf16.mxu0 0
        %452 = vmatpush1.bf16.msra.mxu0 0
        %453 = vmatprep.mubr.bf16.mxu0 0
        %454 = vmatmul.mubr.bf16.gmra.mrb[0].mxu0 %v419
        %v455 = vpop.f32.mrb[0].mxu0
        %v456 = vadd.f32 0.0, %v455
        %v457 = vpop.f32.mrb[0].mxu0
        %v458 = vadd.f32 0.0, %v457
        %v459 = vpop.f32.mrb[0].mxu0
        %v460 = vpop.f32.mrb[0].mxu0
        %461 = vdwg.mxu0
        %462 = vmatprep.subr.bf16.mxu0 %v388
        %463 = vmatpush1.bf16.msra.mxu0 %v387
        %464 = vmatprep.subr.bf16.mxu0 %v396
        %465 = vmatpush1.bf16.msra.mxu0 %v395
        %466 = vmatprep.subr.bf16.mxu0 0
        %467 = vmatpush1.bf16.msra.mxu0 0
        %468 = vmatprep.subr.bf16.mxu0 0
        %469 = vmatpush1.bf16.msra.mxu0 0
        %470 = vmatprep.subr.bf16.mxu0 0
        %471 = vmatpush1.bf16.msra.mxu0 0
        %472 = vmatprep.subr.bf16.mxu0 0
        %473 = vmatpush1.bf16.msra.mxu0 0
        %474 = vmatprep.subr.bf16.mxu0 0
        %475 = vmatpush1.bf16.msra.mxu0 0
        %476 = vmatprep.subr.bf16.mxu0 0
        %477 = vmatpush1.bf16.msra.mxu0 0
        %478 = vmatprep.subr.bf16.mxu0 0
        %479 = vmatpush1.bf16.msra.mxu0 0
        %480 = vmatprep.subr.bf16.mxu0 0
        %481 = vmatpush1.bf16.msra.mxu0 0
        %482 = vmatprep.subr.bf16.mxu0 0
        %483 = vmatpush1.bf16.msra.mxu0 0
        %484 = vmatprep.subr.bf16.mxu0 0
        %485 = vmatpush1.bf16.msra.mxu0 0
        %486 = vmatprep.subr.bf16.mxu0 0
        %487 = vmatpush1.bf16.msra.mxu0 0
        %488 = vmatprep.subr.bf16.mxu0 0
        %489 = vmatpush1.bf16.msra.mxu0 0
        %490 = vmatprep.subr.bf16.mxu0 0
        %491 = vmatpush1.bf16.msra.mxu0 0
        %492 = vmatprep.subr.bf16.mxu0 0
        %493 = vmatpush1.bf16.msra.mxu0 0
        %494 = vmatprep.mubr.bf16.mxu0 0
        %495 = vmatmul.mubr.bf16.gmra.mrb[0].mxu0 %v419
        %v496 = vpop.f32.mrb[0].mxu0
        %v497 = vadd.f32 0.0, %v496
        %v498 = vpop.f32.mrb[0].mxu0
        %v499 = vadd.f32 0.0, %v498
        %v500 = vpop.f32.mrb[0].mxu0
        %v501 = vpop.f32.mrb[0].mxu0
        %502 = vdwg.mxu0
        %503 = vmatprep.subr.bf16.mxu0 %v390
        %504 = vmatpush1.bf16.msra.mxu0 %v389
        %505 = vmatprep.subr.bf16.mxu0 %v398
        %506 = vmatpush1.bf16.msra.mxu0 %v397
        %507 = vmatprep.subr.bf16.mxu0 0
        %508 = vmatpush1.bf16.msra.mxu0 0
        %509 = vmatprep.subr.bf16.mxu0 0
        %510 = vmatpush1.bf16.msra.mxu0 0
        %511 = vmatprep.subr.bf16.mxu0 0
        %512 = vmatpush1.bf16.msra.mxu0 0
        %513 = vmatprep.subr.bf16.mxu0 0
        %514 = vmatpush1.bf16.msra.mxu0 0
        %515 = vmatprep.subr.bf16.mxu0 0
        %516 = vmatpush1.bf16.msra.mxu0 0
        %517 = vmatprep.subr.bf16.mxu0 0
        %518 = vmatpush1.bf16.msra.mxu0 0
        %519 = vmatprep.subr.bf16.mxu0 0
        %520 = vmatpush1.bf16.msra.mxu0 0
        %521 = vmatprep.subr.bf16.mxu0 0
        %522 = vmatpush1.bf16.msra.mxu0 0
        %523 = vmatprep.subr.bf16.mxu0 0
        %524 = vmatpush1.bf16.msra.mxu0 0
        %525 = vmatprep.subr.bf16.mxu0 0
        %526 = vmatpush1.bf16.msra.mxu0 0
        %527 = vmatprep.subr.bf16.mxu0 0
        %528 = vmatpush1.bf16.msra.mxu0 0
        %529 = vmatprep.subr.bf16.mxu0 0
        %530 = vmatpush1.bf16.msra.mxu0 0
        %531 = vmatprep.subr.bf16.mxu0 0
        %532 = vmatpush1.bf16.msra.mxu0 0
        %533 = vmatprep.subr.bf16.mxu0 0
        %534 = vmatpush1.bf16.msra.mxu0 0
        %535 = vmatprep.mubr.bf16.mxu0 0
        %536 = vmatmul.mubr.bf16.gmra.mrb[0].mxu0 %v419
        %v537 = vpop.f32.mrb[0].mxu0
        %v538 = vadd.f32 0.0, %v537
        %v539 = vpop.f32.mrb[0].mxu0
        %v540 = vadd.f32 0.0, %v539
        %v541 = vpop.f32.mrb[0].mxu0
        %v542 = vpop.f32.mrb[0].mxu0
        %543 = vdwg.mxu0
        %544 = vmatprep.subr.bf16.mxu0 %v392
        %545 = vmatpush1.bf16.msra.mxu0 %v391
        %546 = vmatprep.subr.bf16.mxu0 %v400
        %547 = vmatpush1.bf16.msra.mxu0 %v399
        %548 = vmatprep.subr.bf16.mxu0 0
        %549 = vmatpush1.bf16.msra.mxu0 0
        %550 = vmatprep.subr.bf16.mxu0 0
        %551 = vmatpush1.bf16.msra.mxu0 0
        %552 = vmatprep.subr.bf16.mxu0 0
        %553 = vmatpush1.bf16.msra.mxu0 0
        %554 = vmatprep.subr.bf16.mxu0 0
        %555 = vmatpush1.bf16.msra.mxu0 0
        %556 = vmatprep.subr.bf16.mxu0 0
        %557 = vmatpush1.bf16.msra.mxu0 0
        %558 = vmatprep.subr.bf16.mxu0 0
        %559 = vmatpush1.bf16.msra.mxu0 0
        %560 = vmatprep.subr.bf16.mxu0 0
        %561 = vmatpush1.bf16.msra.mxu0 0
        %562 = vmatprep.subr.bf16.mxu0 0
        %563 = vmatpush1.bf16.msra.mxu0 0
        %564 = vmatprep.subr.bf16.mxu0 0
        %565 = vmatpush1.bf16.msra.mxu0 0
        %566 = vmatprep.subr.bf16.mxu0 0
        %567 = vmatpush1.bf16.msra.mxu0 0
        %568 = vmatprep.subr.bf16.mxu0 0
        %569 = vmatpush1.bf16.msra.mxu0 0
        %570 = vmatprep.subr.bf16.mxu0 0
        %571 = vmatpush1.bf16.msra.mxu0 0
        %572 = vmatprep.subr.bf16.mxu0 0
        %573 = vmatpush1.bf16.msra.mxu0 0
        %574 = vmatprep.subr.bf16.mxu0 0
        %575 = vmatpush1.bf16.msra.mxu0 0
        %576 = vmatprep.mubr.bf16.mxu0 0
        %577 = vmatmul.mubr.bf16.gmra.mrb[0].mxu0 %v419
        %v578 = vpop.f32.mrb[0].mxu0
        %v579 = vadd.f32 0.0, %v578
        %v580 = vpop.f32.mrb[0].mxu0
        %v581 = vadd.f32 0.0, %v580
        %v582 = vpop.f32.mrb[0].mxu0
        %v583 = vpop.f32.mrb[0].mxu0
        %584 = vdwg.mxu0
        %s585 = scalar_lea.vmem %s291, 128 [#allocation2]
        %v586 = vld [vmem:[%s585] sm:$0xff]
        %v587 = vld [vmem:[%s585 + $0x8] sm:$0xff]
        %v588 = vld [vmem:[%s585 + $0x10] sm:$0xff]
        %v589 = vld [vmem:[%s585 + $0x18] sm:$0xff]
        %v590 = vld [vmem:[%s585 + $0x20] sm:$0xff]
        %v591 = vld [vmem:[%s585 + $0x28] sm:$0xff]
        %v592 = vld [vmem:[%s585 + $0x30] sm:$0xff]
        %v593 = vld [vmem:[%s585 + $0x38] sm:$0xff]
        %v594 = vld [vmem:[%s585 + $0x40] sm:$0xff]
        %v595 = vld [vmem:[%s585 + $0x48] sm:$0xff]
        %v596 = vld [vmem:[%s585 + $0x50] sm:$0xff]
        %v597 = vld [vmem:[%s585 + $0x58] sm:$0xff]
        %v598 = vld [vmem:[%s585 + $0x60] sm:$0xff]
        %v599 = vld [vmem:[%s585 + $0x68] sm:$0xff]
        %v600 = vld [vmem:[%s585 + $0x70] sm:$0xff]
        %v601 = vld [vmem:[%s585 + $0x78] sm:$0xff]
        %v618 = vunpack.c.l.b16 %v586
        %v619 = vunpack.c.h.b16 %v586
        %v620 = vunpack.c.l.b16 %v587
        %v621 = vunpack.c.h.b16 %v587
        %v622 = vunpack.c.l.b16 %v588
        %v623 = vunpack.c.h.b16 %v588
        %v624 = vunpack.c.l.b16 %v589
        %v625 = vunpack.c.h.b16 %v589
        %v626 = vunpack.c.l.b16 %v590
        %v627 = vunpack.c.h.b16 %v590
        %v628 = vunpack.c.l.b16 %v591
        %v629 = vunpack.c.h.b16 %v591
        %v630 = vunpack.c.l.b16 %v592
        %v631 = vunpack.c.h.b16 %v592
        %v632 = vunpack.c.l.b16 %v593
        %v633 = vunpack.c.h.b16 %v593
        %v634 = vunpack.c.l.b16 %v594
        %v635 = vunpack.c.h.b16 %v594
        %v636 = vunpack.c.l.b16 %v595
        %v637 = vunpack.c.h.b16 %v595
        %v638 = vunpack.c.l.b16 %v596
        %v639 = vunpack.c.h.b16 %v596
        %v640 = vunpack.c.l.b16 %v597
        %v641 = vunpack.c.h.b16 %v597
        %v642 = vunpack.c.l.b16 %v598
        %v643 = vunpack.c.h.b16 %v598
        %v644 = vunpack.c.l.b16 %v599
        %v645 = vunpack.c.h.b16 %v599
        %v646 = vunpack.c.l.b16 %v600
        %v647 = vunpack.c.h.b16 %v600
        %v648 = vunpack.c.l.b16 %v601
        %v649 = vunpack.c.h.b16 %v601
        %v650 = vpack.c.b16 %v626, %v618
        %v651 = vpack.c.b16 %v627, %v619
        %v652 = vpack.c.b16 %v628, %v620
        %v653 = vpack.c.b16 %v629, %v621
        %v654 = vpack.c.b16 %v630, %v622
        %v655 = vpack.c.b16 %v631, %v623
        %v656 = vpack.c.b16 %v632, %v624
        %v657 = vpack.c.b16 %v633, %v625
        %v658 = vpack.c.b16 %v642, %v634
        %v659 = vpack.c.b16 %v643, %v635
        %v660 = vpack.c.b16 %v644, %v636
        %v661 = vpack.c.b16 %v645, %v637
        %v662 = vpack.c.b16 %v646, %v638
        %v663 = vpack.c.b16 %v647, %v639
        %v664 = vpack.c.b16 %v648, %v640
        %v665 = vpack.c.b16 %v649, %v641
        %682 = vmatprep.subr.bf16.mxu0 %v651
        %683 = vmatpush1.bf16.msra.mxu0 %v650
        %684 = vmatprep.subr.bf16.mxu0 %v659
        %685 = vmatpush1.bf16.msra.mxu0 %v658
        %686 = vmatprep.subr.bf16.mxu0 0
        %687 = vmatpush1.bf16.msra.mxu0 0
        %688 = vmatprep.subr.bf16.mxu0 0
        %689 = vmatpush1.bf16.msra.mxu0 0
        %690 = vmatprep.subr.bf16.mxu0 0
        %691 = vmatpush1.bf16.msra.mxu0 0
        %692 = vmatprep.subr.bf16.mxu0 0
        %693 = vmatpush1.bf16.msra.mxu0 0
        %694 = vmatprep.subr.bf16.mxu0 0
        %695 = vmatpush1.bf16.msra.mxu0 0
        %696 = vmatprep.subr.bf16.mxu0 0
        %697 = vmatpush1.bf16.msra.mxu0 0
        %698 = vmatprep.subr.bf16.mxu0 0
        %699 = vmatpush1.bf16.msra.mxu0 0
        %700 = vmatprep.subr.bf16.mxu0 0
        %701 = vmatpush1.bf16.msra.mxu0 0
        %702 = vmatprep.subr.bf16.mxu0 0
        %703 = vmatpush1.bf16.msra.mxu0 0
        %704 = vmatprep.subr.bf16.mxu0 0
        %705 = vmatpush1.bf16.msra.mxu0 0
        %706 = vmatprep.subr.bf16.mxu0 0
        %707 = vmatpush1.bf16.msra.mxu0 0
        %708 = vmatprep.subr.bf16.mxu0 0
        %709 = vmatpush1.bf16.msra.mxu0 0
        %710 = vmatprep.subr.bf16.mxu0 0
        %711 = vmatpush1.bf16.msra.mxu0 0
        %712 = vmatprep.subr.bf16.mxu0 0
        %713 = vmatpush1.bf16.msra.mxu0 0
        %714 = vmatprep.mubr.bf16.mxu0 0
        %715 = vmatmul.mubr.bf16.gmra.mrb[0].mxu0 %v419
        %v716 = vpop.f32.mrb[0].mxu0
        %v717 = vadd.f32 0.0, %v716
        %v718 = vpop.f32.mrb[0].mxu0
        %v719 = vadd.f32 0.0, %v718
        %v720 = vpop.f32.mrb[0].mxu0
        %v721 = vpop.f32.mrb[0].mxu0
        %722 = vdwg.mxu0
        %723 = vmatprep.subr.bf16.mxu0 %v653
        %724 = vmatpush1.bf16.msra.mxu0 %v652
        %725 = vmatprep.subr.bf16.mxu0 %v661
        %726 = vmatpush1.bf16.msra.mxu0 %v660
        %727 = vmatprep.subr.bf16.mxu0 0
        %728 = vmatpush1.bf16.msra.mxu0 0
        %729 = vmatprep.subr.bf16.mxu0 0
        %730 = vmatpush1.bf16.msra.mxu0 0
        %731 = vmatprep.subr.bf16.mxu0 0
        %732 = vmatpush1.bf16.msra.mxu0 0
        %733 = vmatprep.subr.bf16.mxu0 0
        %734 = vmatpush1.bf16.msra.mxu0 0
        %735 = vmatprep.subr.bf16.mxu0 0
        %736 = vmatpush1.bf16.msra.mxu0 0
        %737 = vmatprep.subr.bf16.mxu0 0
        %738 = vmatpush1.bf16.msra.mxu0 0
        %739 = vmatprep.subr.bf16.mxu0 0
        %740 = vmatpush1.bf16.msra.mxu0 0
        %741 = vmatprep.subr.bf16.mxu0 0
        %742 = vmatpush1.bf16.msra.mxu0 0
        %743 = vmatprep.subr.bf16.mxu0 0
        %744 = vmatpush1.bf16.msra.mxu0 0
        %745 = vmatprep.subr.bf16.mxu0 0
        %746 = vmatpush1.bf16.msra.mxu0 0
        %747 = vmatprep.subr.bf16.mxu0 0
        %748 = vmatpush1.bf16.msra.mxu0 0
        %749 = vmatprep.subr.bf16.mxu0 0
        %750 = vmatpush1.bf16.msra.mxu0 0
        %751 = vmatprep.subr.bf16.mxu0 0
        %752 = vmatpush1.bf16.msra.mxu0 0
        %753 = vmatprep.subr.bf16.mxu0 0
        %754 = vmatpush1.bf16.msra.mxu0 0
        %755 = vmatprep.mubr.bf16.mxu0 0
        %756 = vmatmul.mubr.bf16.gmra.mrb[0].mxu0 %v419
        %v757 = vpop.f32.mrb[0].mxu0
        %v758 = vadd.f32 0.0, %v757
        %v759 = vpop.f32.mrb[0].mxu0
        %v760 = vadd.f32 0.0, %v759
        %v761 = vpop.f32.mrb[0].mxu0
        %v762 = vpop.f32.mrb[0].mxu0
        %763 = vdwg.mxu0
        %764 = vmatprep.subr.bf16.mxu0 %v655
        %765 = vmatpush1.bf16.msra.mxu0 %v654
        %766 = vmatprep.subr.bf16.mxu0 %v663
        %767 = vmatpush1.bf16.msra.mxu0 %v662
        %768 = vmatprep.subr.bf16.mxu0 0
        %769 = vmatpush1.bf16.msra.mxu0 0
        %770 = vmatprep.subr.bf16.mxu0 0
        %771 = vmatpush1.bf16.msra.mxu0 0
        %772 = vmatprep.subr.bf16.mxu0 0
        %773 = vmatpush1.bf16.msra.mxu0 0
        %774 = vmatprep.subr.bf16.mxu0 0
        %775 = vmatpush1.bf16.msra.mxu0 0
        %776 = vmatprep.subr.bf16.mxu0 0
        %777 = vmatpush1.bf16.msra.mxu0 0
        %778 = vmatprep.subr.bf16.mxu0 0
        %779 = vmatpush1.bf16.msra.mxu0 0
        %780 = vmatprep.subr.bf16.mxu0 0
        %781 = vmatpush1.bf16.msra.mxu0 0
        %782 = vmatprep.subr.bf16.mxu0 0
        %783 = vmatpush1.bf16.msra.mxu0 0
        %784 = vmatprep.subr.bf16.mxu0 0
        %785 = vmatpush1.bf16.msra.mxu0 0
        %786 = vmatprep.subr.bf16.mxu0 0
        %787 = vmatpush1.bf16.msra.mxu0 0
        %788 = vmatprep.subr.bf16.mxu0 0
        %789 = vmatpush1.bf16.msra.mxu0 0
        %790 = vmatprep.subr.bf16.mxu0 0
        %791 = vmatpush1.bf16.msra.mxu0 0
        %792 = vmatprep.subr.bf16.mxu0 0
        %793 = vmatpush1.bf16.msra.mxu0 0
        %794 = vmatprep.subr.bf16.mxu0 0
        %795 = vmatpush1.bf16.msra.mxu0 0
        %796 = vmatprep.mubr.bf16.mxu0 0
        %797 = vmatmul.mubr.bf16.gmra.mrb[0].mxu0 %v419
        %v798 = vpop.f32.mrb[0].mxu0
        %v799 = vadd.f32 0.0, %v798
        %v800 = vpop.f32.mrb[0].mxu0
        %v801 = vadd.f32 0.0, %v800
        %v802 = vpop.f32.mrb[0].mxu0
        %v803 = vpop.f32.mrb[0].mxu0
        %804 = vdwg.mxu0
        %805 = vmatprep.subr.bf16.mxu0 %v657
        %806 = vmatpush1.bf16.msra.mxu0 %v656
        %807 = vmatprep.subr.bf16.mxu0 %v665
        %808 = vmatpush1.bf16.msra.mxu0 %v664
        %809 = vmatprep.subr.bf16.mxu0 0
        %810 = vmatpush1.bf16.msra.mxu0 0
        %811 = vmatprep.subr.bf16.mxu0 0
        %812 = vmatpush1.bf16.msra.mxu0 0
        %813 = vmatprep.subr.bf16.mxu0 0
        %814 = vmatpush1.bf16.msra.mxu0 0
        %815 = vmatprep.subr.bf16.mxu0 0
        %816 = vmatpush1.bf16.msra.mxu0 0
        %817 = vmatprep.subr.bf16.mxu0 0
        %818 = vmatpush1.bf16.msra.mxu0 0
        %819 = vmatprep.subr.bf16.mxu0 0
        %820 = vmatpush1.bf16.msra.mxu0 0
        %821 = vmatprep.subr.bf16.mxu0 0
        %822 = vmatpush1.bf16.msra.mxu0 0
        %823 = vmatprep.subr.bf16.mxu0 0
        %824 = vmatpush1.bf16.msra.mxu0 0
        %825 = vmatprep.subr.bf16.mxu0 0
        %826 = vmatpush1.bf16.msra.mxu0 0
        %827 = vmatprep.subr.bf16.mxu0 0
        %828 = vmatpush1.bf16.msra.mxu0 0
        %829 = vmatprep.subr.bf16.mxu0 0
        %830 = vmatpush1.bf16.msra.mxu0 0
        %831 = vmatprep.subr.bf16.mxu0 0
        %832 = vmatpush1.bf16.msra.mxu0 0
        %833 = vmatprep.subr.bf16.mxu0 0
        %834 = vmatpush1.bf16.msra.mxu0 0
        %835 = vmatprep.subr.bf16.mxu0 0
        %836 = vmatpush1.bf16.msra.mxu0 0
        %837 = vmatprep.mubr.bf16.mxu0 0
        %838 = vmatmul.mubr.bf16.gmra.mrb[0].mxu0 %v419
        %v839 = vpop.f32.mrb[0].mxu0
        %v840 = vadd.f32 0.0, %v839
        %v841 = vpop.f32.mrb[0].mxu0
        %v842 = vadd.f32 0.0, %v841
        %v843 = vpop.f32.mrb[0].mxu0
        %v844 = vpop.f32.mrb[0].mxu0
        %845 = vdwg.mxu0
        %v846 = vmax.f32 %v456, %v717
        %v847 = vmax.f32 %v458, %v719
        %v848 = vmax.f32 %v497, %v758
        %v849 = vmax.f32 %v499, %v760
        %v850 = vmax.f32 %v538, %v799
        %v851 = vmax.f32 %v540, %v801
        %v852 = vmax.f32 %v579, %v840
        %v853 = vmax.f32 %v581, %v842
        %s854 = scalar_lea.vmem %s291, 256 [#allocation2]
        %v855 = vld [vmem:[%s854] sm:$0xff]
        %v856 = vld [vmem:[%s854 + $0x8] sm:$0xff]
        %v857 = vld [vmem:[%s854 + $0x10] sm:$0xff]
        %v858 = vld [vmem:[%s854 + $0x18] sm:$0xff]
        %v859 = vld [vmem:[%s854 + $0x20] sm:$0xff]
        %v860 = vld [vmem:[%s854 + $0x28] sm:$0xff]
        %v861 = vld [vmem:[%s854 + $0x30] sm:$0xff]
        %v862 = vld [vmem:[%s854 + $0x38] sm:$0xff]
        %v863 = vld [vmem:[%s854 + $0x40] sm:$0xff]
        %v864 = vld [vmem:[%s854 + $0x48] sm:$0xff]
        %v865 = vld [vmem:[%s854 + $0x50] sm:$0xff]
        %v866 = vld [vmem:[%s854 + $0x58] sm:$0xff]
        %v867 = vld [vmem:[%s854 + $0x60] sm:$0xff]
        %v868 = vld [vmem:[%s854 + $0x68] sm:$0xff]
        %v869 = vld [vmem:[%s854 + $0x70] sm:$0xff]
        %v870 = vld [vmem:[%s854 + $0x78] sm:$0xff]
        %v887 = vunpack.c.l.b16 %v855
        %v888 = vunpack.c.h.b16 %v855
        %v889 = vunpack.c.l.b16 %v856
        %v890 = vunpack.c.h.b16 %v856
        %v891 = vunpack.c.l.b16 %v857
        %v892 = vunpack.c.h.b16 %v857
        %v893 = vunpack.c.l.b16 %v858
        %v894 = vunpack.c.h.b16 %v858
        %v895 = vunpack.c.l.b16 %v859
        %v896 = vunpack.c.h.b16 %v859
        %v897 = vunpack.c.l.b16 %v860
        %v898 = vunpack.c.h.b16 %v860
        %v899 = vunpack.c.l.b16 %v861
        %v900 = vunpack.c.h.b16 %v861
        %v901 = vunpack.c.l.b16 %v862
        %v902 = vunpack.c.h.b16 %v862
        %v903 = vunpack.c.l.b16 %v863
        %v904 = vunpack.c.h.b16 %v863
        %v905 = vunpack.c.l.b16 %v864
        %v906 = vunpack.c.h.b16 %v864
        %v907 = vunpack.c.l.b16 %v865
        %v908 = vunpack.c.h.b16 %v865
        %v909 = vunpack.c.l.b16 %v866
        %v910 = vunpack.c.h.b16 %v866
        %v911 = vunpack.c.l.b16 %v867
        %v912 = vunpack.c.h.b16 %v867
        %v913 = vunpack.c.l.b16 %v868
        %v914 = vunpack.c.h.b16 %v868
        %v915 = vunpack.c.l.b16 %v869
        %v916 = vunpack.c.h.b16 %v869
        %v917 = vunpack.c.l.b16 %v870
        %v918 = vunpack.c.h.b16 %v870
        %v919 = vpack.c.b16 %v895, %v887
        %v920 = vpack.c.b16 %v896, %v888
        %v921 = vpack.c.b16 %v897, %v889
        %v922 = vpack.c.b16 %v898, %v890
        %v923 = vpack.c.b16 %v899, %v891
        %v924 = vpack.c.b16 %v900, %v892
        %v925 = vpack.c.b16 %v901, %v893
        %v926 = vpack.c.b16 %v902, %v894
        %v927 = vpack.c.b16 %v911, %v903
        %v928 = vpack.c.b16 %v912, %v904
        %v929 = vpack.c.b16 %v913, %v905
        %v930 = vpack.c.b16 %v914, %v906
        %v931 = vpack.c.b16 %v915, %v907
        %v932 = vpack.c.b16 %v916, %v908
        %v933 = vpack.c.b16 %v917, %v909
        %v934 = vpack.c.b16 %v918, %v910
        %951 = vmatprep.subr.bf16.mxu0 %v920
        %952 = vmatpush1.bf16.msra.mxu0 %v919
        %953 = vmatprep.subr.bf16.mxu0 %v928
        %954 = vmatpush1.bf16.msra.mxu0 %v927
        %955 = vmatprep.subr.bf16.mxu0 0
        %956 = vmatpush1.bf16.msra.mxu0 0
        %957 = vmatprep.subr.bf16.mxu0 0
        %958 = vmatpush1.bf16.msra.mxu0 0
        %959 = vmatprep.subr.bf16.mxu0 0
        %960 = vmatpush1.bf16.msra.mxu0 0
        %961 = vmatprep.subr.bf16.mxu0 0
        %962 = vmatpush1.bf16.msra.mxu0 0
        %963 = vmatprep.subr.bf16.mxu0 0
        %964 = vmatpush1.bf16.msra.mxu0 0
        %965 = vmatprep.subr.bf16.mxu0 0
        %966 = vmatpush1.bf16.msra.mxu0 0
        %967 = vmatprep.subr.bf16.mxu0 0
        %968 = vmatpush1.bf16.msra.mxu0 0
        %969 = vmatprep.subr.bf16.mxu0 0
        %970 = vmatpush1.bf16.msra.mxu0 0
        %971 = vmatprep.subr.bf16.mxu0 0
        %972 = vmatpush1.bf16.msra.mxu0 0
        %973 = vmatprep.subr.bf16.mxu0 0
        %974 = vmatpush1.bf16.msra.mxu0 0
        %975 = vmatprep.subr.bf16.mxu0 0
        %976 = vmatpush1.bf16.msra.mxu0 0
        %977 = vmatprep.subr.bf16.mxu0 0
        %978 = vmatpush1.bf16.msra.mxu0 0
        %979 = vmatprep.subr.bf16.mxu0 0
        %980 = vmatpush1.bf16.msra.mxu0 0
        %981 = vmatprep.subr.bf16.mxu0 0
        %982 = vmatpush1.bf16.msra.mxu0 0
        %983 = vmatprep.mubr.bf16.mxu0 0
        %984 = vmatmul.mubr.bf16.gmra.mrb[0].mxu0 %v419
        %v985 = vpop.f32.mrb[0].mxu0
        %v986 = vadd.f32 0.0, %v985
        %v987 = vpop.f32.mrb[0].mxu0
        %v988 = vadd.f32 0.0, %v987
        %v989 = vpop.f32.mrb[0].mxu0
        %v990 = vpop.f32.mrb[0].mxu0
        %991 = vdwg.mxu0
        %992 = vmatprep.subr.bf16.mxu0 %v922
        %993 = vmatpush1.bf16.msra.mxu0 %v921
        %994 = vmatprep.subr.bf16.mxu0 %v930
        %995 = vmatpush1.bf16.msra.mxu0 %v929
        %996 = vmatprep.subr.bf16.mxu0 0
        %997 = vmatpush1.bf16.msra.mxu0 0
        %998 = vmatprep.subr.bf16.mxu0 0
        %999 = vmatpush1.bf16.msra.mxu0 0
        %1000 = vmatprep.subr.bf16.mxu0 0
        %1001 = vmatpush1.bf16.msra.mxu0 0
        %1002 = vmatprep.subr.bf16.mxu0 0
        %1003 = vmatpush1.bf16.msra.mxu0 0
        %1004 = vmatprep.subr.bf16.mxu0 0
        %1005 = vmatpush1.bf16.msra.mxu0 0
        %1006 = vmatprep.subr.bf16.mxu0 0
        %1007 = vmatpush1.bf16.msra.mxu0 0
        %1008 = vmatprep.subr.bf16.mxu0 0
        %1009 = vmatpush1.bf16.msra.mxu0 0
        %1010 = vmatprep.subr.bf16.mxu0 0
        %1011 = vmatpush1.bf16.msra.mxu0 0
        %1012 = vmatprep.subr.bf16.mxu0 0
        %1013 = vmatpush1.bf16.msra.mxu0 0
        %1014 = vmatprep.subr.bf16.mxu0 0
        %1015 = vmatpush1.bf16.msra.mxu0 0
        %1016 = vmatprep.subr.bf16.mxu0 0
        %1017 = vmatpush1.bf16.msra.mxu0 0
        %1018 = vmatprep.subr.bf16.mxu0 0
        %1019 = vmatpush1.bf16.msra.mxu0 0
        %1020 = vmatprep.subr.bf16.mxu0 0
        %1021 = vmatpush1.bf16.msra.mxu0 0
        %1022 = vmatprep.subr.bf16.mxu0 0
        %1023 = vmatpush1.bf16.msra.mxu0 0
        %1024 = vmatprep.mubr.bf16.mxu0 0
        %1025 = vmatmul.mubr.bf16.gmra.mrb[0].mxu0 %v419
        %v1026 = vpop.f32.mrb[0].mxu0
        %v1027 = vadd.f32 0.0, %v1026
        %v1028 = vpop.f32.mrb[0].mxu0
        %v1029 = vadd.f32 0.0, %v1028
        %v1030 = vpop.f32.mrb[0].mxu0
        %v1031 = vpop.f32.mrb[0].mxu0
        %1032 = vdwg.mxu0
        %1033 = vmatprep.subr.bf16.mxu0 %v924
        %1034 = vmatpush1.bf16.msra.mxu0 %v923
        %1035 = vmatprep.subr.bf16.mxu0 %v932
        %1036 = vmatpush1.bf16.msra.mxu0 %v931
        %1037 = vmatprep.subr.bf16.mxu0 0
        %1038 = vmatpush1.bf16.msra.mxu0 0
        %1039 = vmatprep.subr.bf16.mxu0 0
        %1040 = vmatpush1.bf16.msra.mxu0 0
        %1041 = vmatprep.subr.bf16.mxu0 0
        %1042 = vmatpush1.bf16.msra.mxu0 0
        %1043 = vmatprep.subr.bf16.mxu0 0
        %1044 = vmatpush1.bf16.msra.mxu0 0
        %1045 = vmatprep.subr.bf16.mxu0 0
        %1046 = vmatpush1.bf16.msra.mxu0 0
        %1047 = vmatprep.subr.bf16.mxu0 0
        %1048 = vmatpush1.bf16.msra.mxu0 0
        %1049 = vmatprep.subr.bf16.mxu0 0
        %1050 = vmatpush1.bf16.msra.mxu0 0
        %1051 = vmatprep.subr.bf16.mxu0 0
        %1052 = vmatpush1.bf16.msra.mxu0 0
        %1053 = vmatprep.subr.bf16.mxu0 0
        %1054 = vmatpush1.bf16.msra.mxu0 0
        %1055 = vmatprep.subr.bf16.mxu0 0
        %1056 = vmatpush1.bf16.msra.mxu0 0
        %1057 = vmatprep.subr.bf16.mxu0 0
        %1058 = vmatpush1.bf16.msra.mxu0 0
        %1059 = vmatprep.subr.bf16.mxu0 0
        %1060 = vmatpush1.bf16.msra.mxu0 0
        %1061 = vmatprep.subr.bf16.mxu0 0
        %1062 = vmatpush1.bf16.msra.mxu0 0
        %1063 = vmatprep.subr.bf16.mxu0 0
        %1064 = vmatpush1.bf16.msra.mxu0 0
        %1065 = vmatprep.mubr.bf16.mxu0 0
        %1066 = vmatmul.mubr.bf16.gmra.mrb[0].mxu0 %v419
        %v1067 = vpop.f32.mrb[0].mxu0
        %v1068 = vadd.f32 0.0, %v1067
        %v1069 = vpop.f32.mrb[0].mxu0
        %v1070 = vadd.f32 0.0, %v1069
        %v1071 = vpop.f32.mrb[0].mxu0
        %v1072 = vpop.f32.mrb[0].mxu0
        %1073 = vdwg.mxu0
        %1074 = vmatprep.subr.bf16.mxu0 %v926
        %1075 = vmatpush1.bf16.msra.mxu0 %v925
        %1076 = vmatprep.subr.bf16.mxu0 %v934
        %1077 = vmatpush1.bf16.msra.mxu0 %v933
        %1078 = vmatprep.subr.bf16.mxu0 0
        %1079 = vmatpush1.bf16.msra.mxu0 0
        %1080 = vmatprep.subr.bf16.mxu0 0
        %1081 = vmatpush1.bf16.msra.mxu0 0
        %1082 = vmatprep.subr.bf16.mxu0 0
        %1083 = vmatpush1.bf16.msra.mxu0 0
        %1084 = vmatprep.subr.bf16.mxu0 0
        %1085 = vmatpush1.bf16.msra.mxu0 0
        %1086 = vmatprep.subr.bf16.mxu0 0
        %1087 = vmatpush1.bf16.msra.mxu0 0
        %1088 = vmatprep.subr.bf16.mxu0 0
        %1089 = vmatpush1.bf16.msra.mxu0 0
        %1090 = vmatprep.subr.bf16.mxu0 0
        %1091 = vmatpush1.bf16.msra.mxu0 0
        %1092 = vmatprep.subr.bf16.mxu0 0
        %1093 = vmatpush1.bf16.msra.mxu0 0
        %1094 = vmatprep.subr.bf16.mxu0 0
        %1095 = vmatpush1.bf16.msra.mxu0 0
        %1096 = vmatprep.subr.bf16.mxu0 0
        %1097 = vmatpush1.bf16.msra.mxu0 0
        %1098 = vmatprep.subr.bf16.mxu0 0
        %1099 = vmatpush1.bf16.msra.mxu0 0
        %1100 = vmatprep.subr.bf16.mxu0 0
        %1101 = vmatpush1.bf16.msra.mxu0 0
        %1102 = vmatprep.subr.bf16.mxu0 0
        %1103 = vmatpush1.bf16.msra.mxu0 0
        %1104 = vmatprep.subr.bf16.mxu0 0
        %1105 = vmatpush1.bf16.msra.mxu0 0
        %1106 = vmatprep.mubr.bf16.mxu0 0
        %1107 = vmatmul.mubr.bf16.gmra.mrb[0].mxu0 %v419
        %v1108 = vpop.f32.mrb[0].mxu0
        %v1109 = vadd.f32 0.0, %v1108
        %v1110 = vpop.f32.mrb[0].mxu0
        %v1111 = vadd.f32 0.0, %v1110
        %v1112 = vpop.f32.mrb[0].mxu0
        %v1113 = vpop.f32.mrb[0].mxu0
        %1114 = vdwg.mxu0
        %v1115 = vmax.f32 %v846, %v986
        %v1116 = vmax.f32 %v847, %v988
        %v1117 = vmax.f32 %v848, %v1027
        %v1118 = vmax.f32 %v849, %v1029
        %v1119 = vmax.f32 %v850, %v1068
        %v1120 = vmax.f32 %v851, %v1070
        %v1121 = vmax.f32 %v852, %v1109
        %v1122 = vmax.f32 %v853, %v1111
        %s1123 = scalar_lea.vmem %s291, 384 [#allocation2]
        %v1124 = vld [vmem:[%s1123] sm:$0xff]
        %v1125 = vld [vmem:[%s1123 + $0x8] sm:$0xff]
        %v1126 = vld [vmem:[%s1123 + $0x10] sm:$0xff]
        %v1127 = vld [vmem:[%s1123 + $0x18] sm:$0xff]
        %v1128 = vld [vmem:[%s1123 + $0x20] sm:$0xff]
        %v1129 = vld [vmem:[%s1123 + $0x28] sm:$0xff]
        %v1130 = vld [vmem:[%s1123 + $0x30] sm:$0xff]
        %v1131 = vld [vmem:[%s1123 + $0x38] sm:$0xff]
        %v1132 = vld [vmem:[%s1123 + $0x40] sm:$0xff]
        %v1133 = vld [vmem:[%s1123 + $0x48] sm:$0xff]
        %v1134 = vld [vmem:[%s1123 + $0x50] sm:$0xff]
        %v1135 = vld [vmem:[%s1123 + $0x58] sm:$0xff]
        %v1136 = vld [vmem:[%s1123 + $0x60] sm:$0xff]
        %v1137 = vld [vmem:[%s1123 + $0x68] sm:$0xff]
        %v1138 = vld [vmem:[%s1123 + $0x70] sm:$0xff]
        %v1139 = vld [vmem:[%s1123 + $0x78] sm:$0xff]
        %v1156 = vunpack.c.l.b16 %v1124
        %v1157 = vunpack.c.h.b16 %v1124
        %v1158 = vunpack.c.l.b16 %v1125
        %v1159 = vunpack.c.h.b16 %v1125
        %v1160 = vunpack.c.l.b16 %v1126
        %v1161 = vunpack.c.h.b16 %v1126
        %v1162 = vunpack.c.l.b16 %v1127
        %v1163 = vunpack.c.h.b16 %v1127
        %v1164 = vunpack.c.l.b16 %v1128
        %v1165 = vunpack.c.h.b16 %v1128
        %v1166 = vunpack.c.l.b16 %v1129
        %v1167 = vunpack.c.h.b16 %v1129
        %v1168 = vunpack.c.l.b16 %v1130
        %v1169 = vunpack.c.h.b16 %v1130
        %v1170 = vunpack.c.l.b16 %v1131
        %v1171 = vunpack.c.h.b16 %v1131
        %v1172 = vunpack.c.l.b16 %v1132
        %v1173 = vunpack.c.h.b16 %v1132
        %v1174 = vunpack.c.l.b16 %v1133
        %v1175 = vunpack.c.h.b16 %v1133
        %v1176 = vunpack.c.l.b16 %v1134
        %v1177 = vunpack.c.h.b16 %v1134
        %v1178 = vunpack.c.l.b16 %v1135
        %v1179 = vunpack.c.h.b16 %v1135
        %v1180 = vunpack.c.l.b16 %v1136
        %v1181 = vunpack.c.h.b16 %v1136
        %v1182 = vunpack.c.l.b16 %v1137
        %v1183 = vunpack.c.h.b16 %v1137
        %v1184 = vunpack.c.l.b16 %v1138
        %v1185 = vunpack.c.h.b16 %v1138
        %v1186 = vunpack.c.l.b16 %v1139
        %v1187 = vunpack.c.h.b16 %v1139
        %v1188 = vpack.c.b16 %v1164, %v1156
        %v1189 = vpack.c.b16 %v1165, %v1157
        %v1190 = vpack.c.b16 %v1166, %v1158
        %v1191 = vpack.c.b16 %v1167, %v1159
        %v1192 = vpack.c.b16 %v1168, %v1160
        %v1193 = vpack.c.b16 %v1169, %v1161
        %v1194 = vpack.c.b16 %v1170, %v1162
        %v1195 = vpack.c.b16 %v1171, %v1163
        %v1196 = vpack.c.b16 %v1180, %v1172
        %v1197 = vpack.c.b16 %v1181, %v1173
        %v1198 = vpack.c.b16 %v1182, %v1174
        %v1199 = vpack.c.b16 %v1183, %v1175
        %v1200 = vpack.c.b16 %v1184, %v1176
        %v1201 = vpack.c.b16 %v1185, %v1177
        %v1202 = vpack.c.b16 %v1186, %v1178
        %v1203 = vpack.c.b16 %v1187, %v1179
        %1220 = vmatprep.subr.bf16.mxu0 %v1189
        %1221 = vmatpush1.bf16.msra.mxu0 %v1188
        %1222 = vmatprep.subr.bf16.mxu0 %v1197
        %1223 = vmatpush1.bf16.msra.mxu0 %v1196
        %1224 = vmatprep.subr.bf16.mxu0 0
        %1225 = vmatpush1.bf16.msra.mxu0 0
        %1226 = vmatprep.subr.bf16.mxu0 0
        %1227 = vmatpush1.bf16.msra.mxu0 0
        %1228 = vmatprep.subr.bf16.mxu0 0
        %1229 = vmatpush1.bf16.msra.mxu0 0
        %1230 = vmatprep.subr.bf16.mxu0 0
        %1231 = vmatpush1.bf16.msra.mxu0 0
        %1232 = vmatprep.subr.bf16.mxu0 0
        %1233 = vmatpush1.bf16.msra.mxu0 0
        %1234 = vmatprep.subr.bf16.mxu0 0
        %1235 = vmatpush1.bf16.msra.mxu0 0
        %1236 = vmatprep.subr.bf16.mxu0 0
        %1237 = vmatpush1.bf16.msra.mxu0 0
        %1238 = vmatprep.subr.bf16.mxu0 0
        %1239 = vmatpush1.bf16.msra.mxu0 0
        %1240 = vmatprep.subr.bf16.mxu0 0
        %1241 = vmatpush1.bf16.msra.mxu0 0
        %1242 = vmatprep.subr.bf16.mxu0 0
        %1243 = vmatpush1.bf16.msra.mxu0 0
        %1244 = vmatprep.subr.bf16.mxu0 0
        %1245 = vmatpush1.bf16.msra.mxu0 0
        %1246 = vmatprep.subr.bf16.mxu0 0
        %1247 = vmatpush1.bf16.msra.mxu0 0
        %1248 = vmatprep.subr.bf16.mxu0 0
        %1249 = vmatpush1.bf16.msra.mxu0 0
        %1250 = vmatprep.subr.bf16.mxu0 0
        %1251 = vmatpush1.bf16.msra.mxu0 0
        %1252 = vmatprep.mubr.bf16.mxu0 0
        %1253 = vmatmul.mubr.bf16.gmra.mrb[0].mxu0 %v419
        %v1254 = vpop.f32.mrb[0].mxu0
        %v1255 = vadd.f32 0.0, %v1254
        %v1256 = vpop.f32.mrb[0].mxu0
        %v1257 = vadd.f32 0.0, %v1256
        %v1258 = vpop.f32.mrb[0].mxu0
        %v1259 = vpop.f32.mrb[0].mxu0
        %1260 = vdwg.mxu0
        %1261 = vmatprep.subr.bf16.mxu0 %v1191
        %1262 = vmatpush1.bf16.msra.mxu0 %v1190
        %1263 = vmatprep.subr.bf16.mxu0 %v1199
        %1264 = vmatpush1.bf16.msra.mxu0 %v1198
        %1265 = vmatprep.subr.bf16.mxu0 0
        %1266 = vmatpush1.bf16.msra.mxu0 0
        %1267 = vmatprep.subr.bf16.mxu0 0
        %1268 = vmatpush1.bf16.msra.mxu0 0
        %1269 = vmatprep.subr.bf16.mxu0 0
        %1270 = vmatpush1.bf16.msra.mxu0 0
        %1271 = vmatprep.subr.bf16.mxu0 0
        %1272 = vmatpush1.bf16.msra.mxu0 0
        %1273 = vmatprep.subr.bf16.mxu0 0
        %1274 = vmatpush1.bf16.msra.mxu0 0
        %1275 = vmatprep.subr.bf16.mxu0 0
        %1276 = vmatpush1.bf16.msra.mxu0 0
        %1277 = vmatprep.subr.bf16.mxu0 0
        %1278 = vmatpush1.bf16.msra.mxu0 0
        %1279 = vmatprep.subr.bf16.mxu0 0
        %1280 = vmatpush1.bf16.msra.mxu0 0
        %1281 = vmatprep.subr.bf16.mxu0 0
        %1282 = vmatpush1.bf16.msra.mxu0 0
        %1283 = vmatprep.subr.bf16.mxu0 0
        %1284 = vmatpush1.bf16.msra.mxu0 0
        %1285 = vmatprep.subr.bf16.mxu0 0
        %1286 = vmatpush1.bf16.msra.mxu0 0
        %1287 = vmatprep.subr.bf16.mxu0 0
        %1288 = vmatpush1.bf16.msra.mxu0 0
        %1289 = vmatprep.subr.bf16.mxu0 0
        %1290 = vmatpush1.bf16.msra.mxu0 0
        %1291 = vmatprep.subr.bf16.mxu0 0
        %1292 = vmatpush1.bf16.msra.mxu0 0
        %1293 = vmatprep.mubr.bf16.mxu0 0
        %1294 = vmatmul.mubr.bf16.gmra.mrb[0].mxu0 %v419
        %v1295 = vpop.f32.mrb[0].mxu0
        %v1296 = vadd.f32 0.0, %v1295
        %v1297 = vpop.f32.mrb[0].mxu0
        %v1298 = vadd.f32 0.0, %v1297
        %v1299 = vpop.f32.mrb[0].mxu0
        %v1300 = vpop.f32.mrb[0].mxu0
        %1301 = vdwg.mxu0
        %1302 = vmatprep.subr.bf16.mxu0 %v1193
        %1303 = vmatpush1.bf16.msra.mxu0 %v1192
        %1304 = vmatprep.subr.bf16.mxu0 %v1201
        %1305 = vmatpush1.bf16.msra.mxu0 %v1200
        %1306 = vmatprep.subr.bf16.mxu0 0
        %1307 = vmatpush1.bf16.msra.mxu0 0
        %1308 = vmatprep.subr.bf16.mxu0 0
        %1309 = vmatpush1.bf16.msra.mxu0 0
        %1310 = vmatprep.subr.bf16.mxu0 0
        %1311 = vmatpush1.bf16.msra.mxu0 0
        %1312 = vmatprep.subr.bf16.mxu0 0
        %1313 = vmatpush1.bf16.msra.mxu0 0
        %1314 = vmatprep.subr.bf16.mxu0 0
        %1315 = vmatpush1.bf16.msra.mxu0 0
        %1316 = vmatprep.subr.bf16.mxu0 0
        %1317 = vmatpush1.bf16.msra.mxu0 0
        %1318 = vmatprep.subr.bf16.mxu0 0
        %1319 = vmatpush1.bf16.msra.mxu0 0
        %1320 = vmatprep.subr.bf16.mxu0 0
        %1321 = vmatpush1.bf16.msra.mxu0 0
        %1322 = vmatprep.subr.bf16.mxu0 0
        %1323 = vmatpush1.bf16.msra.mxu0 0
        %1324 = vmatprep.subr.bf16.mxu0 0
        %1325 = vmatpush1.bf16.msra.mxu0 0
        %1326 = vmatprep.subr.bf16.mxu0 0
        %1327 = vmatpush1.bf16.msra.mxu0 0
        %1328 = vmatprep.subr.bf16.mxu0 0
        %1329 = vmatpush1.bf16.msra.mxu0 0
        %1330 = vmatprep.subr.bf16.mxu0 0
        %1331 = vmatpush1.bf16.msra.mxu0 0
        %1332 = vmatprep.subr.bf16.mxu0 0
        %1333 = vmatpush1.bf16.msra.mxu0 0
        %1334 = vmatprep.mubr.bf16.mxu0 0
        %1335 = vmatmul.mubr.bf16.gmra.mrb[0].mxu0 %v419
        %v1336 = vpop.f32.mrb[0].mxu0
        %v1337 = vadd.f32 0.0, %v1336
        %v1338 = vpop.f32.mrb[0].mxu0
        %v1339 = vadd.f32 0.0, %v1338
        %v1340 = vpop.f32.mrb[0].mxu0
        %v1341 = vpop.f32.mrb[0].mxu0
        %1342 = vdwg.mxu0
        %1343 = vmatprep.subr.bf16.mxu0 %v1195
        %1344 = vmatpush1.bf16.msra.mxu0 %v1194
        %1345 = vmatprep.subr.bf16.mxu0 %v1203
        %1346 = vmatpush1.bf16.msra.mxu0 %v1202
        %1347 = vmatprep.subr.bf16.mxu0 0
        %1348 = vmatpush1.bf16.msra.mxu0 0
        %1349 = vmatprep.subr.bf16.mxu0 0
        %1350 = vmatpush1.bf16.msra.mxu0 0
        %1351 = vmatprep.subr.bf16.mxu0 0
        %1352 = vmatpush1.bf16.msra.mxu0 0
        %1353 = vmatprep.subr.bf16.mxu0 0
        %1354 = vmatpush1.bf16.msra.mxu0 0
        %1355 = vmatprep.subr.bf16.mxu0 0
        %1356 = vmatpush1.bf16.msra.mxu0 0
        %1357 = vmatprep.subr.bf16.mxu0 0
        %1358 = vmatpush1.bf16.msra.mxu0 0
        %1359 = vmatprep.subr.bf16.mxu0 0
        %1360 = vmatpush1.bf16.msra.mxu0 0
        %1361 = vmatprep.subr.bf16.mxu0 0
        %1362 = vmatpush1.bf16.msra.mxu0 0
        %1363 = vmatprep.subr.bf16.mxu0 0
        %1364 = vmatpush1.bf16.msra.mxu0 0
        %1365 = vmatprep.subr.bf16.mxu0 0
        %1366 = vmatpush1.bf16.msra.mxu0 0
        %1367 = vmatprep.subr.bf16.mxu0 0
        %1368 = vmatpush1.bf16.msra.mxu0 0
        %1369 = vmatprep.subr.bf16.mxu0 0
        %1370 = vmatpush1.bf16.msra.mxu0 0
        %1371 = vmatprep.subr.bf16.mxu0 0
        %1372 = vmatpush1.bf16.msra.mxu0 0
        %1373 = vmatprep.subr.bf16.mxu0 0
        %1374 = vmatpush1.bf16.msra.mxu0 0
        %1375 = vmatprep.mubr.bf16.mxu0 0
        %1376 = vmatmul.mubr.bf16.gmra.mrb[0].mxu0 %v419
        %v1377 = vpop.f32.mrb[0].mxu0
        %v1378 = vadd.f32 0.0, %v1377
        %v1379 = vpop.f32.mrb[0].mxu0
        %v1380 = vadd.f32 0.0, %v1379
        %v1381 = vpop.f32.mrb[0].mxu0
        %v1382 = vpop.f32.mrb[0].mxu0
        %1383 = vdwg.mxu0
        %v1384 = vmax.f32 %v1115, %v1255
        %v1385 = vmax.f32 %v1116, %v1257
        %v1386 = vmax.f32 %v1117, %v1296
        %v1387 = vmax.f32 %v1118, %v1298
        %v1388 = vmax.f32 %v1119, %v1337
        %v1389 = vmax.f32 %v1120, %v1339
        %v1390 = vmax.f32 %v1121, %v1378
        %v1391 = vmax.f32 %v1122, %v1380
        %v1392 = vld [vmem:[%s2] sm:$0xff]
        %1394 = vset.pattern.permute.xlu0 0
        %1395 = vperm.xlu0 %1394, %v1392
        %v1396 = vpop.permute.xlu0 %1395
        %v1398 = vadd.f32 %v1384, %v1396
        %v1399 = vadd.f32 %v1385, %v1396
        %v1400 = vadd.f32 %v1386, %v1396
        %v1401 = vadd.f32 %v1387, %v1396
        %v1402 = vadd.f32 %v1388, %v1396
        %v1403 = vadd.f32 %v1389, %v1396
        %v1404 = vadd.f32 %v1390, %v1396
        %v1405 = vadd.f32 %v1391, %v1396
        %v1406 = vmax.f32 %v1398, 0.0
        %v1407 = vmax.f32 %v1399, 0.0
        %v1408 = vmax.f32 %v1400, 0.0
        %v1409 = vmax.f32 %v1401, 0.0
        %v1410 = vmax.f32 %v1402, 0.0
        %v1411 = vmax.f32 %v1403, 0.0
        %v1412 = vmax.f32 %v1404, 0.0
        %v1413 = vmax.f32 %v1405, 0.0
        %1414 = vst [vmem:[%s317] sm:$0xff] %v1406
        %1415 = vst [vmem:[%s317 + $0x8] sm:$0xff] %v1407
        %1416 = vst [vmem:[%s317 + $0x10] sm:$0xff] %v1408
        %1417 = vst [vmem:[%s317 + $0x18] sm:$0xff] %v1409
        %1418 = vst [vmem:[%s317 + $0x20] sm:$0xff] %v1410
        %1419 = vst [vmem:[%s317 + $0x28] sm:$0xff] %v1411
        %1420 = vst [vmem:[%s317 + $0x30] sm:$0xff] %v1412
        %1421 = vst [vmem:[%s317 + $0x38] sm:$0xff] %v1413
        %s1422 = smul.u32 8, %s14
        %p1423 = scmp.lt.s32.totalorder %s1422, 15
        %s1424 = scalar_select %p1423, %s1422, 15
        %s1425 = smul.addr %s1424, 8
        %s1426 = scalar_lea.vmem %s3, %s1425
        // Predicated region
        $region56: #{nn_forward.4} parent=50 // pred_check
          %p1427 = pneg %p100
        $region57: #{nn_forward.4} parent=50 // pred_check_branch
          %1429 = sbr.rel (%p1427) target = $region59
        $region58: #{nn_forward.4} parent=50 // pred_region
          %s1430 = smul.u32 8, %s14
        $region59: #{nn_forward.4} parent=50 // pred_fallthru
          _
      $region51: #{nn_forward.4} parent=5 // pred_fallthru
        _
      %p1431 = scmp.le.s32.totalorder 2, %s9
      // Predicated region
      $region60: #{nn_forward.4} parent=5 // pred_check
        %p1432 = pneg %p1431
      $region61: #{nn_forward.4} parent=5 // pred_check_branch
        %1434 = sbr.rel (%p1432) target = $region63
      $region62: #{nn_forward.4} parent=5 // pred_region
        %s1435 = ssub.s32 %s9, 2
        // Predicated region
        $region64: #{nn_forward.4} parent=62 // pred_check
          %p1436 = pneg %p106
        $region65: #{nn_forward.4} parent=62 // pred_check_branch
          %1438 = sbr.rel (%p1436) target = $region67
        $region66: #{nn_forward.4} parent=62 // pred_region
          %s1439 = smul.u32 8, %s15
          %p1440 = scmp.lt.s32.totalorder %s1439, 15
          %s1441 = scalar_select %p1440, %s1439, 15
          %s1442 = smul.addr %s1441, 8
          %s1443 = scalar_lea.vmem %s3, %s1442
        $region67: #{nn_forward.4} parent=62 // pred_fallthru
          _
      $region63: #{nn_forward.4} parent=5 // pred_fallthru
        _
    $region6: #{nn_forward.4} parent=1 // loop_footer
      %s13 = sadd.s32 1, %s9
    $region7: #{nn_forward.4} parent=1 // loop_footer_branch
      %8 = sbr.rel target = $region3
    $region8: #{nn_forward.4} parent=1 // loop_exit
      _

// kernel: nn_forward.5
$region0: #{nn_forward.5}
  #allocation0 [shape = 'u32[]', space=smem, size = 0x4, offset = 0x4, fixed_abs, tag = 'smem constant byte address 0x4 - core index']
  #allocation1 [shape = 'u32[144,128]{1,0:T(1,128)}', space=vmem, size = 0x12000, scoped, tag = 'internal scratch']
  %s0 = inlined_call_operand.vmem [shape: bf16[16,72], index: 0, kind: input, shape index: {}]
  %s1 = inlined_call_operand.vmem [shape: bf16[4,72,128], index: 1, kind: input, shape index: {}]
  %s2 = inlined_call_operand.vmem [shape: f32[16,1], index: 2, kind: input, shape index: {}]
  %s3 = inlined_call_operand.vmem [shape: f32[16,128], index: 3, kind: output, shape index: {}]
  %s4 = sld [smem:[#allocation0]]
  $region22: #{nn_forward.5} parent=0
    _
  %s6 = ssub.s32 1, %s4
  %s7 = scalar_select 0, %s6, %s4
  // Predicated region
  $region2: #{nn_forward.5} parent=0 // pred_check
    _
  $region3: #{nn_forward.5} parent=0 // pred_check_branch
    %9 = sbr.rel (0) target = $region5
  $region4: #{nn_forward.5} parent=0 // pred_region
    _
  $region5: #{nn_forward.5} parent=0 // pred_fallthru
    _
  // Predicated region
  $region6: #{nn_forward.5} parent=0 // pred_check
    _
  $region7: #{nn_forward.5} parent=0 // pred_check_branch
    %11 = sbr.rel (0) target = $region9
  $region8: #{nn_forward.5} parent=0 // pred_region
    _
  $region9: #{nn_forward.5} parent=0 // pred_fallthru
    _
  // Predicated region
  $region10: #{nn_forward.5} parent=0 // pred_check
    _
  $region11: #{nn_forward.5} parent=0 // pred_check_branch
    %13 = sbr.rel (0) target = $region13
  $region12: #{nn_forward.5} parent=0 // pred_region
    _
  $region13: #{nn_forward.5} parent=0 // pred_fallthru
    _
  %v15 = vld [vmem:[%s0] sm:$0xf]
  %v16 = vld [vmem:[%s0 + $0x4] sm:$0xf]
  %v17 = vld [vmem:[%s1] sm:$0xf]
  %v18 = vld [vmem:[%s1 + $0x4] sm:$0xf]
  %v19 = vld [vmem:[%s1 + $0x8] sm:$0xf]
  %v20 = vld [vmem:[%s1 + $0xc] sm:$0xf]
  %v21 = vld [vmem:[%s1 + $0x10] sm:$0xf]
  %v22 = vld [vmem:[%s1 + $0x14] sm:$0xf]
  %v23 = vld [vmem:[%s1 + $0x18] sm:$0xf]
  %v24 = vld [vmem:[%s1 + $0x1c] sm:$0xf]
  %v25 = vld [vmem:[%s1 + $0x20] sm:$0xf]
  %v28 = vunpack.c.l.b16 %v15
  %v29 = vunpack.c.l.b16 %v16
  %v30 = vpack.c.b16 %v29, %v28
  %v40 = vunpack.c.l.b16 %v17
  %v41 = vunpack.c.l.b16 %v18
  %v42 = vunpack.c.l.b16 %v19
  %v43 = vunpack.c.l.b16 %v20
  %v44 = vunpack.c.l.b16 %v21
  %v45 = vunpack.c.l.b16 %v22
  %v46 = vunpack.c.l.b16 %v23
  %v47 = vunpack.c.l.b16 %v24
  %v48 = vunpack.c.l.b16 %v25
  %v49 = vpack.c.b16 %v41, %v40
  %v50 = vpack.c.b16 %v43, %v42
  %v51 = vpack.c.b16 %v45, %v44
  %v52 = vpack.c.b16 %v47, %v46
  %v53 = vpack.c.b16 %v48, %v48
  %vm58 = vcmask 588800
  %v60 = vsel %vm58, %v30, 0
  %vm62 = vcmask 1043456
  %v64 = vsel %vm62, %v53, 0
  %66 = vmatprep.subr.bf16.mxu0 0
  %67 = vmatpush1.bf16.msra.mxu0 %v49
  %68 = vmatprep.subr.bf16.mxu0 0
  %69 = vmatpush1.bf16.msra.mxu0 %v50
  %70 = vmatprep.subr.bf16.mxu0 0
  %71 = vmatpush1.bf16.msra.mxu0 %v51
  %72 = vmatprep.subr.bf16.mxu0 0
  %73 = vmatpush1.bf16.msra.mxu0 %v52
  %74 = vmatprep.subr.bf16.mxu0 0
  %75 = vmatpush1.bf16.msra.mxu0 %v64
  %76 = vmatprep.subr.bf16.mxu0 0
  %77 = vmatpush1.bf16.msra.mxu0 0
  %78 = vmatprep.subr.bf16.mxu0 0
  %79 = vmatpush1.bf16.msra.mxu0 0
  %80 = vmatprep.subr.bf16.mxu0 0
  %81 = vmatpush1.bf16.msra.mxu0 0
  %82 = vmatprep.subr.bf16.mxu0 0
  %83 = vmatpush1.bf16.msra.mxu0 0
  %84 = vmatprep.subr.bf16.mxu0 0
  %85 = vmatpush1.bf16.msra.mxu0 0
  %86 = vmatprep.subr.bf16.mxu0 0
  %87 = vmatpush1.bf16.msra.mxu0 0
  %88 = vmatprep.subr.bf16.mxu0 0
  %89 = vmatpush1.bf16.msra.mxu0 0
  %90 = vmatprep.subr.bf16.mxu0 0
  %91 = vmatpush1.bf16.msra.mxu0 0
  %92 = vmatprep.subr.bf16.mxu0 0
  %93 = vmatpush1.bf16.msra.mxu0 0
  %94 = vmatprep.subr.bf16.mxu0 0
  %95 = vmatpush1.bf16.msra.mxu0 0
  %96 = vmatprep.subr.bf16.mxu0 0
  %97 = vmatpush1.bf16.msra.mxu0 0
  %98 = vmatprep.mubr.bf16.mxu0 0
  %99 = vmatmul.mubr.bf16.gmra.mrb[0].mxu0 %v60
  %v100 = vpop.f32.mrb[0].mxu0
  %v101 = vadd.f32 0.0, %v100
  %v102 = vpop.f32.mrb[0].mxu0
  %v103 = vpop.f32.mrb[0].mxu0
  %v104 = vadd.f32 0.0, %v103
  %v105 = vpop.f32.mrb[0].mxu0
  %106 = vdwg.mxu0
  %s107 = scalar_lea.vmem %s1, 36
  %v108 = vld [vmem:[%s107] sm:$0xf]
  %v109 = vld [vmem:[%s107 + $0x4] sm:$0xf]
  %v110 = vld [vmem:[%s107 + $0x8] sm:$0xf]
  %v111 = vld [vmem:[%s107 + $0xc] sm:$0xf]
  %v112 = vld [vmem:[%s107 + $0x10] sm:$0xf]
  %v113 = vld [vmem:[%s107 + $0x14] sm:$0xf]
  %v114 = vld [vmem:[%s107 + $0x18] sm:$0xf]
  %v115 = vld [vmem:[%s107 + $0x1c] sm:$0xf]
  %v116 = vld [vmem:[%s107 + $0x20] sm:$0xf]
  %v126 = vunpack.c.l.b16 %v108
  %v127 = vunpack.c.l.b16 %v109
  %v128 = vunpack.c.l.b16 %v110
  %v129 = vunpack.c.l.b16 %v111
  %v130 = vunpack.c.l.b16 %v112
  %v131 = vunpack.c.l.b16 %v113
  %v132 = vunpack.c.l.b16 %v114
  %v133 = vunpack.c.l.b16 %v115
  %v134 = vunpack.c.l.b16 %v116
  %v135 = vpack.c.b16 %v127, %v126
  %v136 = vpack.c.b16 %v129, %v128
  %v137 = vpack.c.b16 %v131, %v130
  %v138 = vpack.c.b16 %v133, %v132
  %v139 = vpack.c.b16 %v134, %v134
  %v145 = vsel %vm62, %v139, 0
  %147 = vmatprep.subr.bf16.mxu0 0
  %148 = vmatpush1.bf16.msra.mxu0 %v135
  %149 = vmatprep.subr.bf16.mxu0 0
  %150 = vmatpush1.bf16.msra.mxu0 %v136
  %151 = vmatprep.subr.bf16.mxu0 0
  %152 = vmatpush1.bf16.msra.mxu0 %v137
  %153 = vmatprep.subr.bf16.mxu0 0
  %154 = vmatpush1.bf16.msra.mxu0 %v138
  %155 = vmatprep.subr.bf16.mxu0 0
  %156 = vmatpush1.bf16.msra.mxu0 %v145
  %157 = vmatprep.subr.bf16.mxu0 0
  %158 = vmatpush1.bf16.msra.mxu0 0
  %159 = vmatprep.subr.bf16.mxu0 0
  %160 = vmatpush1.bf16.msra.mxu0 0
  %161 = vmatprep.subr.bf16.mxu0 0
  %162 = vmatpush1.bf16.msra.mxu0 0
  %163 = vmatprep.subr.bf16.mxu0 0
  %164 = vmatpush1.bf16.msra.mxu0 0
  %165 = vmatprep.subr.bf16.mxu0 0
  %166 = vmatpush1.bf16.msra.mxu0 0
  %167 = vmatprep.subr.bf16.mxu0 0
  %168 = vmatpush1.bf16.msra.mxu0 0
  %169 = vmatprep.subr.bf16.mxu0 0
  %170 = vmatpush1.bf16.msra.mxu0 0
  %171 = vmatprep.subr.bf16.mxu0 0
  %172 = vmatpush1.bf16.msra.mxu0 0
  %173 = vmatprep.subr.bf16.mxu0 0
  %174 = vmatpush1.bf16.msra.mxu0 0
  %175 = vmatprep.subr.bf16.mxu0 0
  %176 = vmatpush1.bf16.msra.mxu0 0
  %177 = vmatprep.subr.bf16.mxu0 0
  %178 = vmatpush1.bf16.msra.mxu0 0
  %179 = vmatprep.mubr.bf16.mxu0 0
  %180 = vmatmul.mubr.bf16.gmra.mrb[0].mxu0 %v60
  %v181 = vpop.f32.mrb[0].mxu0
  %v182 = vadd.f32 0.0, %v181
  %v183 = vpop.f32.mrb[0].mxu0
  %v184 = vpop.f32.mrb[0].mxu0
  %v185 = vadd.f32 0.0, %v184
  %v186 = vpop.f32.mrb[0].mxu0
  %187 = vdwg.mxu0
  %v188 = vmax.f32 %v101, %v182
  %v189 = vmax.f32 %v104, %v185
  %s190 = scalar_lea.vmem %s1, 72
  %v191 = vld [vmem:[%s190] sm:$0xf]
  %v192 = vld [vmem:[%s190 + $0x4] sm:$0xf]
  %v193 = vld [vmem:[%s190 + $0x8] sm:$0xf]
  %v194 = vld [vmem:[%s190 + $0xc] sm:$0xf]
  %v195 = vld [vmem:[%s190 + $0x10] sm:$0xf]
  %v196 = vld [vmem:[%s190 + $0x14] sm:$0xf]
  %v197 = vld [vmem:[%s190 + $0x18] sm:$0xf]
  %v198 = vld [vmem:[%s190 + $0x1c] sm:$0xf]
  %v199 = vld [vmem:[%s190 + $0x20] sm:$0xf]
  %v209 = vunpack.c.l.b16 %v191
  %v210 = vunpack.c.l.b16 %v192
  %v211 = vunpack.c.l.b16 %v193
  %v212 = vunpack.c.l.b16 %v194
  %v213 = vunpack.c.l.b16 %v195
  %v214 = vunpack.c.l.b16 %v196
  %v215 = vunpack.c.l.b16 %v197
  %v216 = vunpack.c.l.b16 %v198
  %v217 = vunpack.c.l.b16 %v199
  %v218 = vpack.c.b16 %v210, %v209
  %v219 = vpack.c.b16 %v212, %v211
  %v220 = vpack.c.b16 %v214, %v213
  %v221 = vpack.c.b16 %v216, %v215
  %v222 = vpack.c.b16 %v217, %v217
  %v228 = vsel %vm62, %v222, 0
  %230 = vmatprep.subr.bf16.mxu0 0
  %231 = vmatpush1.bf16.msra.mxu0 %v218
  %232 = vmatprep.subr.bf16.mxu0 0
  %233 = vmatpush1.bf16.msra.mxu0 %v219
  %234 = vmatprep.subr.bf16.mxu0 0
  %235 = vmatpush1.bf16.msra.mxu0 %v220
  %236 = vmatprep.subr.bf16.mxu0 0
  %237 = vmatpush1.bf16.msra.mxu0 %v221
  %238 = vmatprep.subr.bf16.mxu0 0
  %239 = vmatpush1.bf16.msra.mxu0 %v228
  %240 = vmatprep.subr.bf16.mxu0 0
  %241 = vmatpush1.bf16.msra.mxu0 0
  %242 = vmatprep.subr.bf16.mxu0 0
  %243 = vmatpush1.bf16.msra.mxu0 0
  %244 = vmatprep.subr.bf16.mxu0 0
  %245 = vmatpush1.bf16.msra.mxu0 0
  %246 = vmatprep.subr.bf16.mxu0 0
  %247 = vmatpush1.bf16.msra.mxu0 0
  %248 = vmatprep.subr.bf16.mxu0 0
  %249 = vmatpush1.bf16.msra.mxu0 0
  %250 = vmatprep.subr.bf16.mxu0 0
  %251 = vmatpush1.bf16.msra.mxu0 0
  %252 = vmatprep.subr.bf16.mxu0 0
  %253 = vmatpush1.bf16.msra.mxu0 0
  %254 = vmatprep.subr.bf16.mxu0 0
  %255 = vmatpush1.bf16.msra.mxu0 0
  %256 = vmatprep.subr.bf16.mxu0 0
  %257 = vmatpush1.bf16.msra.mxu0 0
  %258 = vmatprep.subr.bf16.mxu0 0
  %259 = vmatpush1.bf16.msra.mxu0 0
  %260 = vmatprep.subr.bf16.mxu0 0
  %261 = vmatpush1.bf16.msra.mxu0 0
  %262 = vmatprep.mubr.bf16.mxu0 0
  %263 = vmatmul.mubr.bf16.gmra.mrb[0].mxu0 %v60
  %v264 = vpop.f32.mrb[0].mxu0
  %v265 = vadd.f32 0.0, %v264
  %v266 = vpop.f32.mrb[0].mxu0
  %v267 = vpop.f32.mrb[0].mxu0
  %v268 = vadd.f32 0.0, %v267
  %v269 = vpop.f32.mrb[0].mxu0
  %270 = vdwg.mxu0
  %v271 = vmax.f32 %v188, %v265
  %v272 = vmax.f32 %v189, %v268
  %s273 = scalar_lea.vmem %s1, 108
  %v274 = vld [vmem:[%s273] sm:$0xf]
  %v275 = vld [vmem:[%s273 + $0x4] sm:$0xf]
  %v276 = vld [vmem:[%s273 + $0x8] sm:$0xf]
  %v277 = vld [vmem:[%s273 + $0xc] sm:$0xf]
  %v278 = vld [vmem:[%s273 + $0x10] sm:$0xf]
  %v279 = vld [vmem:[%s273 + $0x14] sm:$0xf]
  %v280 = vld [vmem:[%s273 + $0x18] sm:$0xf]
  %v281 = vld [vmem:[%s273 + $0x1c] sm:$0xf]
  %v282 = vld [vmem:[%s273 + $0x20] sm:$0xf]
  %v292 = vunpack.c.l.b16 %v274
  %v293 = vunpack.c.l.b16 %v275
  %v294 = vunpack.c.l.b16 %v276
  %v295 = vunpack.c.l.b16 %v277
  %v296 = vunpack.c.l.b16 %v278
  %v297 = vunpack.c.l.b16 %v279
  %v298 = vunpack.c.l.b16 %v280
  %v299 = vunpack.c.l.b16 %v281
  %v300 = vunpack.c.l.b16 %v282
  %v301 = vpack.c.b16 %v293, %v292
  %v302 = vpack.c.b16 %v295, %v294
  %v303 = vpack.c.b16 %v297, %v296
  %v304 = vpack.c.b16 %v299, %v298
  %v305 = vpack.c.b16 %v300, %v300
  %v311 = vsel %vm62, %v305, 0
  %313 = vmatprep.subr.bf16.mxu0 0
  %314 = vmatpush1.bf16.msra.mxu0 %v301
  %315 = vmatprep.subr.bf16.mxu0 0
  %316 = vmatpush1.bf16.msra.mxu0 %v302
  %317 = vmatprep.subr.bf16.mxu0 0
  %318 = vmatpush1.bf16.msra.mxu0 %v303
  %319 = vmatprep.subr.bf16.mxu0 0
  %320 = vmatpush1.bf16.msra.mxu0 %v304
  %321 = vmatprep.subr.bf16.mxu0 0
  %322 = vmatpush1.bf16.msra.mxu0 %v311
  %323 = vmatprep.subr.bf16.mxu0 0
  %324 = vmatpush1.bf16.msra.mxu0 0
  %325 = vmatprep.subr.bf16.mxu0 0
  %326 = vmatpush1.bf16.msra.mxu0 0
  %327 = vmatprep.subr.bf16.mxu0 0
  %328 = vmatpush1.bf16.msra.mxu0 0
  %329 = vmatprep.subr.bf16.mxu0 0
  %330 = vmatpush1.bf16.msra.mxu0 0
  %331 = vmatprep.subr.bf16.mxu0 0
  %332 = vmatpush1.bf16.msra.mxu0 0
  %333 = vmatprep.subr.bf16.mxu0 0
  %334 = vmatpush1.bf16.msra.mxu0 0
  %335 = vmatprep.subr.bf16.mxu0 0
  %336 = vmatpush1.bf16.msra.mxu0 0
  %337 = vmatprep.subr.bf16.mxu0 0
  %338 = vmatpush1.bf16.msra.mxu0 0
  %339 = vmatprep.subr.bf16.mxu0 0
  %340 = vmatpush1.bf16.msra.mxu0 0
  %341 = vmatprep.subr.bf16.mxu0 0
  %342 = vmatpush1.bf16.msra.mxu0 0
  %343 = vmatprep.subr.bf16.mxu0 0
  %344 = vmatpush1.bf16.msra.mxu0 0
  %345 = vmatprep.mubr.bf16.mxu0 0
  %346 = vmatmul.mubr.bf16.gmra.mrb[0].mxu0 %v60
  %v347 = vpop.f32.mrb[0].mxu0
  %v348 = vadd.f32 0.0, %v347
  %v349 = vpop.f32.mrb[0].mxu0
  %v350 = vpop.f32.mrb[0].mxu0
  %v351 = vadd.f32 0.0, %v350
  %v352 = vpop.f32.mrb[0].mxu0
  %353 = vdwg.mxu0
  %v354 = vmax.f32 %v271, %v348
  %v355 = vmax.f32 %v272, %v351
  %v356 = vld [vmem:[%s2] sm:$0xff]
  %v357 = vld [vmem:[%s2 + $0x8] sm:$0xff]
  %359 = vset.pattern.permute.xlu0 0
  %360 = vperm.xlu0 %359, %v356
  %v361 = vpop.permute.xlu0 %360
  %364 = vset.pattern.permute.xlu0 0
  %365 = vperm.xlu0 %364, %v357
  %v366 = vpop.permute.xlu0 %365
  %v368 = vadd.f32 %v354, %v361
  %v369 = vadd.f32 %v355, %v366
  %v370 = vmax.f32 %v368, 0.0
  %v371 = vmax.f32 %v369, 0.0
  %372 = vst [vmem:[%s3] sm:$0xff] %v370
  %373 = vst [vmem:[%s3 + $0x8] sm:$0xff] %v371
  // Predicated region
  $region14: #{nn_forward.5} parent=0 // pred_check
    _
  $region15: #{nn_forward.5} parent=0 // pred_check_branch
    %375 = sbr.rel (0) target = $region17
  $region16: #{nn_forward.5} parent=0 // pred_region
    _
  $region17: #{nn_forward.5} parent=0 // pred_fallthru
    _
  // Predicated region
  $region18: #{nn_forward.5} parent=0 // pred_check
    _
  $region19: #{nn_forward.5} parent=0 // pred_check_branch
    %377 = sbr.rel (0) target = $region21
  $region20: #{nn_forward.5} parent=0 // pred_region
    _
  $region21: #{nn_forward.5} parent=0 // pred_fallthru
    _

// kernel: nn_forward.6
$region0: #{nn_forward.6}
  #allocation0 [shape = 'u32[]', space=smem, size = 0x4, offset = 0x4, fixed_abs, tag = 'smem constant byte address 0x4 - core index']
  #allocation1 [shape = 'u32[144,128]{1,0:T(1,128)}', space=vmem, size = 0x12000, scoped, tag = 'internal scratch']
  %s0 = inlined_call_operand.vmem [shape: bf16[16,144], index: 0, kind: input, shape index: {}]
  %s1 = inlined_call_operand.vmem [shape: bf16[144,128], index: 1, kind: input, shape index: {}]
  %s2 = inlined_call_operand.vmem [shape: f32[16,1], index: 2, kind: input, shape index: {}]
  %s3 = inlined_call_operand.vmem [shape: f32[16,128], index: 3, kind: output, shape index: {}]
  %s4 = sld [smem:[#allocation0]]
  $region22: #{nn_forward.6} parent=0
    _
  %s6 = ssub.s32 1, %s4
  %s7 = scalar_select 0, %s6, %s4
  // Predicated region
  $region2: #{nn_forward.6} parent=0 // pred_check
    _
  $region3: #{nn_forward.6} parent=0 // pred_check_branch
    %9 = sbr.rel (0) target = $region5
  $region4: #{nn_forward.6} parent=0 // pred_region
    _
  $region5: #{nn_forward.6} parent=0 // pred_fallthru
    _
  // Predicated region
  $region6: #{nn_forward.6} parent=0 // pred_check
    _
  $region7: #{nn_forward.6} parent=0 // pred_check_branch
    %11 = sbr.rel (0) target = $region9
  $region8: #{nn_forward.6} parent=0 // pred_region
    _
  $region9: #{nn_forward.6} parent=0 // pred_fallthru
    _
  // Predicated region
  $region10: #{nn_forward.6} parent=0 // pred_check
    _
  $region11: #{nn_forward.6} parent=0 // pred_check_branch
    %13 = sbr.rel (0) target = $region13
  $region12: #{nn_forward.6} parent=0 // pred_region
    _
  $region13: #{nn_forward.6} parent=0 // pred_fallthru
    _
  %v15 = vld [vmem:[%s0] sm:$0xff]
  %v16 = vld [vmem:[%s0 + $0x8] sm:$0xff]
  %v17 = vld [vmem:[%s1] sm:$0xf]
  %v18 = vld [vmem:[%s1 + $0x4] sm:$0xf]
  %v19 = vld [vmem:[%s1 + $0x8] sm:$0xf]
  %v20 = vld [vmem:[%s1 + $0xc] sm:$0xf]
  %v21 = vld [vmem:[%s1 + $0x10] sm:$0xf]
  %v22 = vld [vmem:[%s1 + $0x14] sm:$0xf]
  %v23 = vld [vmem:[%s1 + $0x18] sm:$0xf]
  %v24 = vld [vmem:[%s1 + $0x1c] sm:$0xf]
  %v25 = vld [vmem:[%s1 + $0x20] sm:$0xf]
  %v26 = vld [vmem:[%s1 + $0x24] sm:$0xf]
  %v27 = vld [vmem:[%s1 + $0x28] sm:$0xf]
  %v28 = vld [vmem:[%s1 + $0x2c] sm:$0xf]
  %v29 = vld [vmem:[%s1 + $0x30] sm:$0xf]
  %v30 = vld [vmem:[%s1 + $0x34] sm:$0xf]
  %v31 = vld [vmem:[%s1 + $0x38] sm:$0xf]
  %v32 = vld [vmem:[%s1 + $0x3c] sm:$0xf]
  %v33 = vld [vmem:[%s1 + $0x40] sm:$0xf]
  %v34 = vld [vmem:[%s1 + $0x44] sm:$0xf]
  %v35 = vld [vmem:[%s2] sm:$0xff]
  %v36 = vld [vmem:[%s2 + $0x8] sm:$0xff]
  %38 = vset.pattern.permute.xlu0 0
  %39 = vperm.xlu0 %38, %v35
  %v40 = vpop.permute.xlu0 %39
  %43 = vset.pattern.permute.xlu0 0
  %44 = vperm.xlu0 %43, %v36
  %v45 = vpop.permute.xlu0 %44
  %v49 = vunpack.c.l.b16 %v15
  %v50 = vunpack.c.h.b16 %v15
  %v51 = vunpack.c.l.b16 %v16
  %v52 = vunpack.c.h.b16 %v16
  %v53 = vpack.c.b16 %v51, %v49
  %v54 = vpack.c.b16 %v52, %v50
  %v74 = vunpack.c.l.b16 %v17
  %v75 = vunpack.c.l.b16 %v18
  %v76 = vunpack.c.l.b16 %v19
  %v77 = vunpack.c.l.b16 %v20
  %v78 = vunpack.c.l.b16 %v21
  %v79 = vunpack.c.l.b16 %v22
  %v80 = vunpack.c.l.b16 %v23
  %v81 = vunpack.c.l.b16 %v24
  %v82 = vunpack.c.l.b16 %v25
  %v83 = vunpack.c.l.b16 %v26
  %v84 = vunpack.c.l.b16 %v27
  %v85 = vunpack.c.l.b16 %v28
  %v86 = vunpack.c.l.b16 %v29
  %v87 = vunpack.c.l.b16 %v30
  %v88 = vunpack.c.l.b16 %v31
  %v89 = vunpack.c.l.b16 %v32
  %v90 = vunpack.c.l.b16 %v33
  %v91 = vunpack.c.l.b16 %v34
  %v92 = vpack.c.b16 %v75, %v74
  %v93 = vpack.c.b16 %v77, %v76
  %v94 = vpack.c.b16 %v79, %v78
  %v95 = vpack.c.b16 %v81, %v80
  %v96 = vpack.c.b16 %v83, %v82
  %v97 = vpack.c.b16 %v85, %v84
  %v98 = vpack.c.b16 %v87, %v86
  %v99 = vpack.c.b16 %v89, %v88
  %v100 = vpack.c.b16 %v91, %v90
  %vm110 = vcmask 130048
  %v112 = vsel %vm110, %v54, 0
  %114 = vmatprep.subr.bf16.mxu0 0
  %115 = vmatpush1.bf16.msra.mxu0 %v92
  %116 = vmatprep.subr.bf16.mxu0 0
  %117 = vmatpush1.bf16.msra.mxu0 %v93
  %118 = vmatprep.subr.bf16.mxu0 0
  %119 = vmatpush1.bf16.msra.mxu0 %v94
  %120 = vmatprep.subr.bf16.mxu0 0
  %121 = vmatpush1.bf16.msra.mxu0 %v95
  %122 = vmatprep.subr.bf16.mxu0 0
  %123 = vmatpush1.bf16.msra.mxu0 %v96
  %124 = vmatprep.subr.bf16.mxu0 0
  %125 = vmatpush1.bf16.msra.mxu0 %v97
  %126 = vmatprep.subr.bf16.mxu0 0
  %127 = vmatpush1.bf16.msra.mxu0 %v98
  %128 = vmatprep.subr.bf16.mxu0 0
  %129 = vmatpush1.bf16.msra.mxu0 %v99
  %130 = vmatprep.subr.bf16.mxu0 0
  %131 = vmatpush1.bf16.msra.mxu0 %v100
  %132 = vmatprep.subr.bf16.mxu0 0
  %133 = vmatpush1.bf16.msra.mxu0 0
  %134 = vmatprep.subr.bf16.mxu0 0
  %135 = vmatpush1.bf16.msra.mxu0 0
  %136 = vmatprep.subr.bf16.mxu0 0
  %137 = vmatpush1.bf16.msra.mxu0 0
  %138 = vmatprep.subr.bf16.mxu0 0
  %139 = vmatpush1.bf16.msra.mxu0 0
  %140 = vmatprep.subr.bf16.mxu0 0
  %141 = vmatpush1.bf16.msra.mxu0 0
  %142 = vmatprep.subr.bf16.mxu0 0
  %143 = vmatpush1.bf16.msra.mxu0 0
  %144 = vmatprep.subr.bf16.mxu0 0
  %145 = vmatpush1.bf16.msra.mxu0 0
  %146 = vmatprep.mubr.bf16.mxu0 %v112
  %147 = vmatmul.mubr.bf16.gmra.mrb[0].mxu0 %v53
  %v148 = vpop.f32.mrb[0].mxu0
  %v149 = vadd.f32 %v40, %v148
  %v150 = vpop.f32.mrb[0].mxu0
  %v151 = vpop.f32.mrb[0].mxu0
  %v152 = vadd.f32 %v45, %v151
  %v153 = vpop.f32.mrb[0].mxu0
  %154 = vdwg.mxu0
  %v155 = vmax.f32 %v149, 0.0
  %v156 = vmax.f32 %v152, 0.0
  %157 = vst [vmem:[%s3] sm:$0xff] %v155
  %158 = vst [vmem:[%s3 + $0x8] sm:$0xff] %v156
  // Predicated region
  $region14: #{nn_forward.6} parent=0 // pred_check
    _
  $region15: #{nn_forward.6} parent=0 // pred_check_branch
    %160 = sbr.rel (0) target = $region17
  $region16: #{nn_forward.6} parent=0 // pred_region
    _
  $region17: #{nn_forward.6} parent=0 // pred_fallthru
    _
  // Predicated region
  $region18: #{nn_forward.6} parent=0 // pred_check
    _
  $region19: #{nn_forward.6} parent=0 // pred_check_branch
    %162 = sbr.rel (0) target = $region21
  $region20: #{nn_forward.6} parent=0 // pred_region
    _
  $region21: #{nn_forward.6} parent=0 // pred_fallthru
    _

// kernel: nn_forward.7
$region0: #{nn_forward.7}
  #allocation0 [shape = 'u32[]', space=smem, size = 0x4, offset = 0x4, fixed_abs, tag = 'smem constant byte address 0x4 - core index']
  #allocation1 [shape = 'u32[144,128]{1,0:T(1,128)}', space=vmem, size = 0x12000, scoped, tag = 'internal scratch']
  %s0 = inlined_call_operand.vmem [shape: f32[2,144], index: 0, kind: input, shape index: {}]
  %s1 = inlined_call_operand.vmem [shape: f32[144,64], index: 1, kind: input, shape index: {}]
  %s2 = inlined_call_operand.vmem [shape: f32[1,64], index: 2, kind: input, shape index: {}]
  %s3 = inlined_call_operand.vmem [shape: f32[64,16], index: 3, kind: input, shape index: {}]
  %s4 = inlined_call_operand.vmem [shape: f32[1,16], index: 4, kind: input, shape index: {}]
  %s5 = inlined_call_operand.vmem [shape: f32[16,2], index: 5, kind: input, shape index: {}]
  %s6 = inlined_call_operand.vmem [shape: f32[1,2], index: 6, kind: input, shape index: {}]
  %s7 = inlined_call_operand.hbm [shape: f32[2,2], index: 7, kind: output, shape index: {}]
  %s8 = sld [smem:[#allocation0]]
  $region38: #{nn_forward.7} parent=0
    _
  %s10 = ssub.s32 1, %s8
  %s11 = scalar_select 0, %s10, %s8
  $region1: #{nn_forward.7} parent=0
    #allocation2 [shape = 'u8[1024]{0}', space=vmem, size = 0x400, scoped, tag = 'output window, operand 0, single buffered']
    #allocation3 [shape = 's32[1]{0}', space=sflag, size = 0x4, scoped, tag = 'scoped memory for nn_forward.7']
    %12 = vsyncpa [#allocation3], 0
    // Predicated region
    $region2: #{nn_forward.7} parent=1 // pred_check
      _
    $region3: #{nn_forward.7} parent=1 // pred_check_branch
      %14 = sbr.rel (0) target = $region5
    $region4: #{nn_forward.7} parent=1 // pred_region
      _
    $region5: #{nn_forward.7} parent=1 // pred_fallthru
      _
    // Predicated region
    $region6: #{nn_forward.7} parent=1 // pred_check
      _
    $region7: #{nn_forward.7} parent=1 // pred_check_branch
      %16 = sbr.rel (0) target = $region9
    $region8: #{nn_forward.7} parent=1 // pred_region
      _
    $region9: #{nn_forward.7} parent=1 // pred_fallthru
      _
    // Predicated region
    $region10: #{nn_forward.7} parent=1 // pred_check
      _
    $region11: #{nn_forward.7} parent=1 // pred_check_branch
      %18 = sbr.rel (0) target = $region13
    $region12: #{nn_forward.7} parent=1 // pred_region
      _
    $region13: #{nn_forward.7} parent=1 // pred_fallthru
      _
    // Predicated region
    $region14: #{nn_forward.7} parent=1 // pred_check
      _
    $region15: #{nn_forward.7} parent=1 // pred_check_branch
      %20 = sbr.rel (0) target = $region17
    $region16: #{nn_forward.7} parent=1 // pred_region
      _
    $region17: #{nn_forward.7} parent=1 // pred_fallthru
      _
    // Predicated region
    $region18: #{nn_forward.7} parent=1 // pred_check
      _
    $region19: #{nn_forward.7} parent=1 // pred_check_branch
      %22 = sbr.rel (0) target = $region21
    $region20: #{nn_forward.7} parent=1 // pred_region
      _
    $region21: #{nn_forward.7} parent=1 // pred_fallthru
      _
    // Predicated region
    $region22: #{nn_forward.7} parent=1 // pred_check
      _
    $region23: #{nn_forward.7} parent=1 // pred_check_branch
      %24 = sbr.rel (0) target = $region25
    $region24: #{nn_forward.7} parent=1 // pred_region
      _
    $region25: #{nn_forward.7} parent=1 // pred_fallthru
      _
    // Predicated region
    $region26: #{nn_forward.7} parent=1 // pred_check
      _
    $region27: #{nn_forward.7} parent=1 // pred_check_branch
      %26 = sbr.rel (0) target = $region29
    $region28: #{nn_forward.7} parent=1 // pred_region
      _
    $region29: #{nn_forward.7} parent=1 // pred_fallthru
      _
    %v27 = vld [vmem:[%s0] sm:$0xf]
    %v28 = vld [vmem:[%s1] sm:$0xff]
    %v29 = vld [vmem:[%s1 + $0x8] sm:$0xff]
    %v30 = vld [vmem:[%s1 + $0x10] sm:$0xff]
    %v31 = vld [vmem:[%s1 + $0x18] sm:$0xff]
    %v32 = vld [vmem:[%s1 + $0x20] sm:$0xff]
    %v33 = vld [vmem:[%s1 + $0x28] sm:$0xff]
    %v34 = vld [vmem:[%s1 + $0x30] sm:$0xff]
    %v35 = vld [vmem:[%s1 + $0x38] sm:$0xff]
    %v36 = vld [vmem:[%s1 + $0x40] sm:$0xff]
    %v37 = vld [vmem:[%s1 + $0x48] sm:$0xff]
    %v38 = vld [vmem:[%s1 + $0x50] sm:$0xff]
    %v39 = vld [vmem:[%s1 + $0x58] sm:$0xff]
    %v40 = vld [vmem:[%s1 + $0x60] sm:$0xff]
    %v41 = vld [vmem:[%s1 + $0x68] sm:$0xff]
    %v42 = vld [vmem:[%s1 + $0x70] sm:$0xff]
    %v43 = vld [vmem:[%s1 + $0x78] sm:$0xff]
    %v44 = vld [vmem:[%s1 + $0x80] sm:$0xff]
    %v45 = vld [vmem:[%s1 + $0x88] sm:$0xff]
    %v46 = vld [vmem:[%s2] sm:$0x1]
    %v48 = vlaneseq
    %v49 = vshrl.u32 %v48, 7
    %v50 = vsub.s32 0, %v49
    %v51 = vrot.slane %v46, %v50
    %v55 = vunpack.c.l.s4 1983009808
    %v56 = vunpack.c.0.s8 %v55
    %v57 = vlaneseq
    %v58 = vshrl.u32 %v57, 7
    %v59 = vsub.s32 %v56, %v58
    %v60 = vrot.slane %v27, %v59
    %v61 = vcombine.high %v60, %v60
    %vm63 = vcmask 130048
    %v64 = vsel %vm63, %v61, 0
    %66 = vmatprep.subr.mxu0 0.0
    %67 = vmatpush1.msra.mxu0 %v28
    %68 = vmatprep.subr.mxu0 0.0
    %69 = vmatpush1.msra.mxu0 %v29
    %70 = vmatprep.subr.mxu0 0.0
    %71 = vmatpush1.msra.mxu0 %v30
    %72 = vmatprep.subr.mxu0 0.0
    %73 = vmatpush1.msra.mxu0 %v31
    %74 = vmatprep.subr.mxu0 0.0
    %75 = vmatpush1.msra.mxu0 %v32
    %76 = vmatprep.subr.mxu0 0.0
    %77 = vmatpush1.msra.mxu0 %v33
    %78 = vmatprep.subr.mxu0 0.0
    %79 = vmatpush1.msra.mxu0 %v34
    %80 = vmatprep.subr.mxu0 0.0
    %81 = vmatpush1.msra.mxu0 %v35
    %82 = vmatprep.subr.mxu0 0.0
    %83 = vmatpush1.msra.mxu0 %v36
    %84 = vmatprep.subr.mxu0 0.0
    %85 = vmatpush1.msra.mxu0 %v37
    %86 = vmatprep.subr.mxu0 0.0
    %87 = vmatpush1.msra.mxu0 %v38
    %88 = vmatprep.subr.mxu0 0.0
    %89 = vmatpush1.msra.mxu0 %v39
    %90 = vmatprep.subr.mxu0 0.0
    %91 = vmatpush1.msra.mxu0 %v40
    %92 = vmatprep.subr.mxu0 0.0
    %93 = vmatpush1.msra.mxu0 %v41
    %94 = vmatprep.subr.mxu0 0.0
    %95 = vmatpush1.msra.mxu0 %v42
    %96 = vmatprep.subr.mxu0 0.0
    %97 = vmatpush1.msra.mxu0 %v43
    %98 = vmatprep.subr.mxu0 0.0
    %99 = vmatpush1.msra.mxu0 %v44
    %100 = vmatprep.subr.mxu0 0.0
    %101 = vmatpush1.msra.mxu0 %v45
    %102 = vmatprep.subr.mxu0 0.0
    %103 = vmatpush1.msra.mxu0 0.0
    %104 = vmatprep.subr.mxu0 0.0
    %105 = vmatpush1.msra.mxu0 0.0
    %106 = vmatprep.subr.mxu0 0.0
    %107 = vmatpush1.msra.mxu0 0.0
    %108 = vmatprep.subr.mxu0 0.0
    %109 = vmatpush1.msra.mxu0 0.0
    %110 = vmatprep.subr.mxu0 0.0
    %111 = vmatpush1.msra.mxu0 0.0
    %112 = vmatprep.subr.mxu0 0.0
    %113 = vmatpush1.msra.mxu0 0.0
    %114 = vmatprep.subr.mxu0 0.0
    %115 = vmatpush1.msra.mxu0 0.0
    %116 = vmatprep.subr.mxu0 0.0
    %117 = vmatpush1.msra.mxu0 0.0
    %118 = vmatprep.subr.mxu0 0.0
    %119 = vmatpush1.msra.mxu0 0.0
    %120 = vmatprep.subr.mxu0 0.0
    %121 = vmatpush1.msra.mxu0 0.0
    %122 = vmatprep.subr.mxu0 0.0
    %123 = vmatpush1.msra.mxu0 0.0
    %124 = vmatprep.subr.mxu0 0.0
    %125 = vmatpush1.msra.mxu0 0.0
    %126 = vmatprep.subr.mxu0 0.0
    %127 = vmatpush1.msra.mxu0 0.0
    %128 = vmatprep.subr.mxu0 0.0
    %129 = vmatpush1.msra.mxu0 0.0
    %130 = vmatprep.mubr.f32.mxu0 %v64
    %131 = vmatmul.mubr.f32.gmra.mrb[0].mxu0 %v60
    %v132 = vpop.f32.mrb[0].mxu0
    %v133 = vadd.f32 %v51, %v132
    %v134 = vpop.f32.mrb[0].mxu0
    %135 = vdwg.mxu0
    %v136 = vmax.f32 %v133, 0.0
    %v137 = vld [vmem:[%s3] sm:$0xff]
    %v138 = vld [vmem:[%s3 + $0x8] sm:$0xff]
    %v139 = vld [vmem:[%s3 + $0x10] sm:$0xff]
    %v140 = vld [vmem:[%s3 + $0x18] sm:$0xff]
    %v141 = vld [vmem:[%s3 + $0x20] sm:$0xff]
    %v142 = vld [vmem:[%s3 + $0x28] sm:$0xff]
    %v143 = vld [vmem:[%s3 + $0x30] sm:$0xff]
    %v144 = vld [vmem:[%s3 + $0x38] sm:$0xff]
    %v145 = vld [vmem:[%s4] sm:$0x1]
    %v147 = vlaneseq
    %v148 = vshrl.u32 %v147, 7
    %v149 = vsub.s32 0, %v148
    %v150 = vrot.slane %v145, %v149
    %vm152 = vcmask 523264
    %v154 = vsel %vm152, %v136, 0
    %156 = vmatprep.subr.mxu0 0.0
    %157 = vmatpush1.msra.mxu0 %v137
    %158 = vmatprep.subr.mxu0 0.0
    %159 = vmatpush1.msra.mxu0 %v138
    %160 = vmatprep.subr.mxu0 0.0
    %161 = vmatpush1.msra.mxu0 %v139
    %162 = vmatprep.subr.mxu0 0.0
    %163 = vmatpush1.msra.mxu0 %v140
    %164 = vmatprep.subr.mxu0 0.0
    %165 = vmatpush1.msra.mxu0 %v141
    %166 = vmatprep.subr.mxu0 0.0
    %167 = vmatpush1.msra.mxu0 %v142
    %168 = vmatprep.subr.mxu0 0.0
    %169 = vmatpush1.msra.mxu0 %v143
    %170 = vmatprep.subr.mxu0 0.0
    %171 = vmatpush1.msra.mxu0 %v144
    %172 = vmatprep.subr.mxu0 0.0
    %173 = vmatpush1.msra.mxu0 0.0
    %174 = vmatprep.subr.mxu0 0.0
    %175 = vmatpush1.msra.mxu0 0.0
    %176 = vmatprep.subr.mxu0 0.0
    %177 = vmatpush1.msra.mxu0 0.0
    %178 = vmatprep.subr.mxu0 0.0
    %179 = vmatpush1.msra.mxu0 0.0
    %180 = vmatprep.subr.mxu0 0.0
    %181 = vmatpush1.msra.mxu0 0.0
    %182 = vmatprep.subr.mxu0 0.0
    %183 = vmatpush1.msra.mxu0 0.0
    %184 = vmatprep.subr.mxu0 0.0
    %185 = vmatpush1.msra.mxu0 0.0
    %186 = vmatprep.subr.mxu0 0.0
    %187 = vmatpush1.msra.mxu0 0.0
    %188 = vmatprep.subr.mxu0 0.0
    %189 = vmatpush1.msra.mxu0 0.0
    %190 = vmatprep.subr.mxu0 0.0
    %191 = vmatpush1.msra.mxu0 0.0
    %192 = vmatprep.subr.mxu0 0.0
    %193 = vmatpush1.msra.mxu0 0.0
    %194 = vmatprep.subr.mxu0 0.0
    %195 = vmatpush1.msra.mxu0 0.0
    %196 = vmatprep.subr.mxu0 0.0
    %197 = vmatpush1.msra.mxu0 0.0
    %198 = vmatprep.subr.mxu0 0.0
    %199 = vmatpush1.msra.mxu0 0.0
    %200 = vmatprep.subr.mxu0 0.0
    %201 = vmatpush1.msra.mxu0 0.0
    %202 = vmatprep.subr.mxu0 0.0
    %203 = vmatpush1.msra.mxu0 0.0
    %204 = vmatprep.subr.mxu0 0.0
    %205 = vmatpush1.msra.mxu0 0.0
    %206 = vmatprep.subr.mxu0 0.0
    %207 = vmatpush1.msra.mxu0 0.0
    %208 = vmatprep.subr.mxu0 0.0
    %209 = vmatpush1.msra.mxu0 0.0
    %210 = vmatprep.subr.mxu0 0.0
    %211 = vmatpush1.msra.mxu0 0.0
    %212 = vmatprep.subr.mxu0 0.0
    %213 = vmatpush1.msra.mxu0 0.0
    %214 = vmatprep.subr.mxu0 0.0
    %215 = vmatpush1.msra.mxu0 0.0
    %216 = vmatprep.subr.mxu0 0.0
    %217 = vmatpush1.msra.mxu0 0.0
    %218 = vmatprep.subr.mxu0 0.0
    %219 = vmatpush1.msra.mxu0 0.0
    %220 = vmatprep.mubr.f32.mxu0 0.0
    %221 = vmatmul.mubr.f32.gmra.mrb[0].mxu0 %v154
    %v222 = vpop.f32.mrb[0].mxu0
    %v223 = vadd.f32 %v150, %v222
    %v224 = vpop.f32.mrb[0].mxu0
    %225 = vdwg.mxu0
    %v226 = vmax.f32 %v223, 0.0
    %v227 = vld [vmem:[%s5] sm:$0xff]
    %v228 = vld [vmem:[%s5 + $0x8] sm:$0xff]
    %v229 = vld [vmem:[%s6] sm:$0x1]
    %v231 = vlaneseq
    %v232 = vshrl.u32 %v231, 7
    %v233 = vsub.s32 0, %v232
    %v234 = vrot.slane %v229, %v233
    %v237 = vsel %vm63, %v226, 0
    %239 = vmatprep.subr.mxu0 0.0
    %240 = vmatpush1.msra.mxu0 %v227
    %241 = vmatprep.subr.mxu0 0.0
    %242 = vmatpush1.msra.mxu0 %v228
    %243 = vmatprep.subr.mxu0 0.0
    %244 = vmatpush1.msra.mxu0 0.0
    %245 = vmatprep.subr.mxu0 0.0
    %246 = vmatpush1.msra.mxu0 0.0
    %247 = vmatprep.subr.mxu0 0.0
    %248 = vmatpush1.msra.mxu0 0.0
    %249 = vmatprep.subr.mxu0 0.0
    %250 = vmatpush1.msra.mxu0 0.0
    %251 = vmatprep.subr.mxu0 0.0
    %252 = vmatpush1.msra.mxu0 0.0
    %253 = vmatprep.subr.mxu0 0.0
    %254 = vmatpush1.msra.mxu0 0.0
    %255 = vmatprep.subr.mxu0 0.0
    %256 = vmatpush1.msra.mxu0 0.0
    %257 = vmatprep.subr.mxu0 0.0
    %258 = vmatpush1.msra.mxu0 0.0
    %259 = vmatprep.subr.mxu0 0.0
    %260 = vmatpush1.msra.mxu0 0.0
    %261 = vmatprep.subr.mxu0 0.0
    %262 = vmatpush1.msra.mxu0 0.0
    %263 = vmatprep.subr.mxu0 0.0
    %264 = vmatpush1.msra.mxu0 0.0
    %265 = vmatprep.subr.mxu0 0.0
    %266 = vmatpush1.msra.mxu0 0.0
    %267 = vmatprep.subr.mxu0 0.0
    %268 = vmatpush1.msra.mxu0 0.0
    %269 = vmatprep.subr.mxu0 0.0
    %270 = vmatpush1.msra.mxu0 0.0
    %271 = vmatprep.subr.mxu0 0.0
    %272 = vmatpush1.msra.mxu0 0.0
    %273 = vmatprep.subr.mxu0 0.0
    %274 = vmatpush1.msra.mxu0 0.0
    %275 = vmatprep.subr.mxu0 0.0
    %276 = vmatpush1.msra.mxu0 0.0
    %277 = vmatprep.subr.mxu0 0.0
    %278 = vmatpush1.msra.mxu0 0.0
    %279 = vmatprep.subr.mxu0 0.0
    %280 = vmatpush1.msra.mxu0 0.0
    %281 = vmatprep.subr.mxu0 0.0
    %282 = vmatpush1.msra.mxu0 0.0
    %283 = vmatprep.subr.mxu0 0.0
    %284 = vmatpush1.msra.mxu0 0.0
    %285 = vmatprep.subr.mxu0 0.0
    %286 = vmatpush1.msra.mxu0 0.0
    %287 = vmatprep.subr.mxu0 0.0
    %288 = vmatpush1.msra.mxu0 0.0
    %289 = vmatprep.subr.mxu0 0.0
    %290 = vmatpush1.msra.mxu0 0.0
    %291 = vmatprep.subr.mxu0 0.0
    %292 = vmatpush1.msra.mxu0 0.0
    %293 = vmatprep.subr.mxu0 0.0
    %294 = vmatpush1.msra.mxu0 0.0
    %295 = vmatprep.subr.mxu0 0.0
    %296 = vmatpush1.msra.mxu0 0.0
    %297 = vmatprep.subr.mxu0 0.0
    %298 = vmatpush1.msra.mxu0 0.0
    %299 = vmatprep.subr.mxu0 0.0
    %300 = vmatpush1.msra.mxu0 0.0
    %301 = vmatprep.subr.mxu0 0.0
    %302 = vmatpush1.msra.mxu0 0.0
    %303 = vmatprep.mubr.f32.mxu0 0.0
    %304 = vmatmul.mubr.f32.gmra.mrb[0].mxu0 %v237
    %v305 = vpop.f32.mrb[0].mxu0
    %v306 = vadd.f32 %v234, %v305
    %v307 = vpop.f32.mrb[0].mxu0
    %308 = vdwg.mxu0
    %vm309 = vcmask 9216
    %v310 = vsel %vm309, %v306, -inf
    %311 = vmax.xlane.f32.xlu0 %v310
    %v312 = vpop.xlane.xlu0 %311
    %v313 = vsub.f32 %v306, %v312
    %v314 = vmul.f32 %v313, 1.442695
    %v315 = vpow.pop %v314
    %v316 = vsel %vm309, %v315, 0.0
    %317 = vadd.xlane.f32.xlu0 %v316
    %v318 = vpop.xlane.xlu0 %317
    %v319 = vrcp.pop %v318
    %v320 = vmul.f32 %v315, %v319
    %321 = vst.msk [vmem:[#allocation2] sm:$0x3] %vm309, %v320
    // Predicated region
    $region30: #{nn_forward.7} parent=1 // pred_check
      _
    $region31: #{nn_forward.7} parent=1 // pred_check_branch
      %323 = sbr.rel (0) target = $region33
    $region32: #{nn_forward.7} parent=1 // pred_region
      %s325 = ssub.s32 32, 32
      %326 = vsyncadd [#allocation3], %s325
      %s328 = sshll.u32 [#allocation2], 4
      %s329 = int_to_ptr.vmem [resolvable:$true] %s328
      %331 = dma.vmem_to_hbm [thread:$0]  %s329, 32, %s7, [#allocation3]
    $region33: #{nn_forward.7} parent=1 // pred_fallthru
      _
    // Predicated region
    $region34: #{nn_forward.7} parent=1 // pred_check
      _
    $region35: #{nn_forward.7} parent=1 // pred_check_branch
      %333 = sbr.rel (0) target = $region37
    $region36: #{nn_forward.7} parent=1 // pred_region
      %334 = dma.done [#allocation3], 32
    $region37: #{nn_forward.7} parent=1 // pred_fallthru
      _
    %335 = vsyncpa [#allocation3], 1

</llo_original>
